<compile_context>
chip_gen: v5e
topology: v5e:2x2
jax: 0.10.0
libtpu: 0.0.40
codegen_flags: <defaults>
</compile_context>

<pallas_src>
import functools

import numpy as np
import jax
import jax.numpy as jnp
from jax.experimental import pallas as pl
from jax.experimental.pallas import tpu as pltpu

OUT_H, OUT_W = 102, 180


# --------------------- static interpolation matrices (numpy) --------------------- #
def _interp_matrix_np(in_size, out_size):
    """(out, in) row-stochastic matrix for 1-D linear interp, align_corners=True."""
    if out_size == 1 or in_size == 1:
        m = np.zeros((out_size, in_size), np.float32)
        m[:, 0] = 1.0
        return m
    scale = (in_size - 1) / (out_size - 1)
    src = np.arange(out_size, dtype=np.float64) * scale
    i0 = np.clip(np.floor(src), 0, in_size - 1).astype(np.int64)
    i1 = np.minimum(i0 + 1, in_size - 1)
    frac = (src - i0).astype(np.float32)
    m = np.zeros((out_size, in_size), np.float32)
    rows = np.arange(out_size)
    m[rows, i0] += (1.0 - frac)
    m[rows, i1] += frac
    return m


# ------------------------- trace-time affine composition ------------------------- #
def _compose_affine(params):
    """Fold all ConvTranspose2d(k=2,s=2) layers and the final 1x1 conv into one
    affine map:  img[c3, B*i+dh, B*j+dw] = b[c3,dh,dw] + sum_c W[c,c3,dh,dw]*x[c,i,j]."""
    w, b = params["upconvs"][0]                       # (Cin, C1, 2, 2), (C1,)
    Wc = w
    bc = jnp.broadcast_to(b[:, None, None], (b.shape[0], 2, 2))
    for (w, b) in params["upconvs"][1:]:
        Cin, _, bh, bw = Wc.shape
        Cn = w.shape[1]
        Wc = jnp.einsum('cpab,poAB->coaAbB', Wc, w).reshape(Cin, Cn, bh * 2, bw * 2)
        bc = (b[:, None, None]
              + jnp.einsum('pab,poAB->oaAbB', bc, w).reshape(Cn, bh * 2, bw * 2))
    wf, bf = params["final"]                          # (3, Clast, 1, 1), (3,)
    wf2 = wf.reshape(wf.shape[0], wf.shape[1])
    Wc = jnp.einsum('coab,Oo->cOab', Wc, wf2)
    bc = bf[:, None, None] + jnp.einsum('oab,Oo->Oab', bc, wf2)
    return Wc, bc                                     # (Cin,3,B,B), (3,B,B)


# ---------------------------------- Pallas kernel --------------------------------- #
def _decoder_kernel(x_ref, m1_ref, b2_ref, o_ref, *, block):
    # x_ref : ((Cin+1)*Hin, Win)          native-layout input rows (+ ones channel)
    # m1_ref: (block, OUT_H, (Cin+1)*Hin) H-interp x composed conv weights
    # b2_ref: (block, Win, OUT_W)         W-interp, split per sub-pixel column dw
    # o_ref : (OUT_H, OUT_W)              one (n, c3) output image
    x = x_ref[...]
    for dw in range(block):                                    # static unroll
        t = jnp.dot(m1_ref[dw], x, preferred_element_type=jnp.float32)   # (OUT_H, Win)
        v = jnp.dot(t, b2_ref[dw], preferred_element_type=jnp.float32)   # (OUT_H, OUT_W)
        if dw == 0:
            o_ref[...] = v
        else:
            o_ref[...] = o_ref[...] + v


# ------------------------------------ forward ------------------------------------- #
def decoder_forward(params, x):
    N, Cin, Hin, Win = x.shape
    num_layers = len(params["upconvs"])
    block = 2 ** num_layers

    # Composed affine chain; fold biases in as a constant-one channel.
    Wc, bc = _compose_affine(params)                                   # (Cin,3,B,B),(3,B,B)
    W_aug = jnp.concatenate([Wc, bc[None]], axis=0)                    # (Cin+1, 3, B, B)

    # Fold H-interp into stage-1 weights, W-interp into stage-2 weights.
    A_np = _interp_matrix_np(Hin * block, OUT_H)                       # (OUT_H, Hin*B)
    A_r = jnp.asarray(A_np.reshape(OUT_H, Hin, block))                 # A_r[p, i, dh]
    M1 = jnp.einsum('pid,cKdw->Kwpci', A_r, W_aug)                     # (3,B,OUT_H,Cin+1,Hin)
    M1 = M1.reshape(3, block, OUT_H, (Cin + 1) * Hin)

    Bw_np = _interp_matrix_np(Win * block, OUT_W).T                    # (Win*B, OUT_W)
    B2 = jnp.asarray(Bw_np.reshape(Win, block, OUT_W).transpose(1, 0, 2))  # (B, Win, OUT_W)

    # Input stays in native NCHW layout: rows = (channel, row), cols = W.
    ones = jnp.ones((N, 1, Hin, Win), jnp.float32)
    x_rows = jnp.concatenate([x.astype(jnp.float32), ones], axis=1)
    x_rows = x_rows.reshape(N, (Cin + 1) * Hin, Win)

    kernel = functools.partial(_decoder_kernel, block=block)
    out = pl.pallas_call(
        kernel,
        out_shape=jax.ShapeDtypeStruct((N, 3, OUT_H, OUT_W), jnp.float32),
        grid=(3, N),
        in_specs=[
            pl.BlockSpec((None, (Cin + 1) * Hin, Win), lambda c, n: (n, 0, 0)),
            pl.BlockSpec((None, block, OUT_H, (Cin + 1) * Hin), lambda c, n: (c, 0, 0, 0)),
            pl.BlockSpec((block, Win, OUT_W), lambda c, n: (0, 0, 0)),
        ],
        out_specs=pl.BlockSpec((None, None, OUT_H, OUT_W), lambda c, n: (n, c, 0, 0)),
        compiler_params=pltpu.CompilerParams(
            dimension_semantics=("parallel", "parallel")),
    )(x_rows, M1, B2)
    return out


# ----------------------------- pure-JAX reference check ---------------------------- #
def _ref_forward(params, x):
    for (w, b) in params["upconvs"]:
        N, C, H, W = x.shape
        Co = w.shape[1]
        y = jnp.einsum('nchw,coab->nohawb', x, w).reshape(N, Co, 2 * H, 2 * W)
        x = y + b[None, :, None, None]
    wf, bf = params["final"]
    x = jnp.einsum('nchw,Oc->nOhw', x, wf[:, :, 0, 0]) + bf[None, :, None, None]
    A = jnp.asarray(_interp_matrix_np(x.shape[2], OUT_H))
    Bm = jnp.asarray(_interp_matrix_np(x.shape[3], OUT_W))
    x = jnp.einsum('ph,nchw->ncpw', A, x)
    x = jnp.einsum('qw,ncpw->ncpq', Bm, x)
    return x


# ---------------------------------- parameter init --------------------------------- #
def init_decoder_params(key, in_channels, out_channels, num_layers):
    params = {"upconvs": []}
    cin, cout = in_channels, out_channels
    for _ in range(num_layers):
        key, k1, k2 = jax.random.split(key, 3)
        bound = 1.0 / float(np.sqrt(cin * 4))
        w = jax.random.uniform(k1, (cin, cout, 2, 2), jnp.float32, -bound, bound)
        b = jax.random.uniform(k2, (cout,), jnp.float32, -bound, bound)
        params["upconvs"].append((w, b))
        cin, cout = cout, cout // 2
    key, k1, k2 = jax.random.split(key, 3)
    bound = 1.0 / float(np.sqrt(cin))
    wf = jax.random.uniform(k1, (3, cin, 1, 1), jnp.float32, -bound, bound)
    bf = jax.random.uniform(k2, (3,), jnp.float32, -bound, bound)
    params["final"] = (wf, bf)
    return params


# --------------------------------------- main --------------------------------------- #
if __name__ == "__main__":
    key = jax.random.PRNGKey(0)
    k_param, k_input = jax.random.split(key)

    in_channels, out_channels, num_layers = 8, 4, 2
    params = init_decoder_params(k_param, in_channels, out_channels, num_layers)

    # x: (N, C, H, W) = (2, 8, 16, 16) -> upconvs -> (2, 2, 64, 64)
    #    -> final 1x1 conv -> (2, 3, 64, 64) -> bilinear -> (2, 3, 102, 180)
    x = jax.random.normal(k_input, (2, in_channels, 16, 16), dtype=jnp.float32)

    out = jax.block_until_ready(jax.jit(decoder_forward)(params, x))
    assert out.shape == (2, 3, 102, 180), out.shape
    assert bool(jnp.all(jnp.isfinite(out)))

    ref = jax.block_until_ready(jax.jit(_ref_forward)(params, x))
    assert bool(jnp.allclose(out, ref, atol=2e-4, rtol=2e-3)), \
        float(jnp.max(jnp.abs(out - ref)))

    print("KERNEL_OK")
</pallas_src>

<mosaic_0001>
module attributes {stable_mosaic.version = 11 : i64} {
  func.func @_decoder_kernel(%arg0: i32, %arg1: i32, %arg2: memref<1x144x16xf32, #tpu.memory_space<vmem>>, %arg3: memref<1x4x102x144xf32, #tpu.memory_space<vmem>>, %arg4: memref<4x16x180xf32, #tpu.memory_space<vmem>>, %arg5: memref<1x1x102x180xf32, #tpu.memory_space<vmem>>) attributes {dimension_semantics = [#tpu.dimension_semantics<parallel>, #tpu.dimension_semantics<parallel>], iteration_bounds = array<i64: 3, 2>, scalar_prefetch = 0 : i64, scratch_operands = 0 : i64, tpu.core_type = #tpu.core_type<tc>, window_params = [{transform_indices = @transform_0, window_bounds = array<i64: 1, 144, 16>}, {transform_indices = @transform_1, window_bounds = array<i64: 1, 4, 102, 144>}, {pipeline_mode = #tpu.pipeline_mode<synchronous>, transform_indices = @transform_2, window_bounds = array<i64: 4, 16, 180>}, {transform_indices = @transform_3, window_bounds = array<i64: 1, 1, 102, 180>}]} {
    %c0 = arith.constant 0 : index
    %c0_0 = arith.constant 0 : index
    %c0_1 = arith.constant 0 : index
    %0 = vector.load %arg2[%c0, %c0_0, %c0_1] : memref<1x144x16xf32, #tpu.memory_space<vmem>>, vector<1x144x16xf32>
    %1 = vector.shape_cast %0 : vector<1x144x16xf32> to vector<144x16xf32>
    %c0_2 = arith.constant 0 : index
    %c0_3 = arith.constant 0 : index
    %c0_4 = arith.constant 0 : index
    %c0_5 = arith.constant 0 : index
    %2 = vector.load %arg3[%c0_2, %c0_3, %c0_4, %c0_5] : memref<1x4x102x144xf32, #tpu.memory_space<vmem>>, vector<1x1x102x144xf32>
    %3 = vector.shape_cast %2 : vector<1x1x102x144xf32> to vector<102x144xf32>
    %cst = arith.constant dense<0.000000e+00> : vector<102x16xf32>
    %4 = tpu.matmul %3, %1, %cst {dimension_numbers = #tpu.dot_dimension_numbers<[1], [0], [0], [1], [0, 0, 1, 1], [], []>} : vector<102x144xf32>, vector<144x16xf32>, vector<102x16xf32> -> vector<102x16xf32>
    %c0_6 = arith.constant 0 : index
    %c0_7 = arith.constant 0 : index
    %c0_8 = arith.constant 0 : index
    %5 = vector.load %arg4[%c0_6, %c0_7, %c0_8] : memref<4x16x180xf32, #tpu.memory_space<vmem>>, vector<1x16x180xf32>
    %6 = vector.shape_cast %5 : vector<1x16x180xf32> to vector<16x180xf32>
    %cst_9 = arith.constant dense<0.000000e+00> : vector<102x180xf32>
    %7 = tpu.matmul %4, %6, %cst_9 {dimension_numbers = #tpu.dot_dimension_numbers<[1], [0], [0], [1], [0, 0, 1, 1], [], []>} : vector<102x16xf32>, vector<16x180xf32>, vector<102x180xf32> -> vector<102x180xf32>
    %c0_10 = arith.constant 0 : index
    %c0_11 = arith.constant 0 : index
    %c0_12 = arith.constant 0 : index
    %c0_13 = arith.constant 0 : index
    %8 = vector.load %arg5[%c0_10, %c0_11, %c0_12, %c0_13] : memref<1x1x102x180xf32, #tpu.memory_space<vmem>>, vector<1x1x102x180xf32>
    %9 = vector.shape_cast %8 : vector<1x1x102x180xf32> to vector<102x180xf32>
    %10 = vector.shape_cast %7 : vector<102x180xf32> to vector<1x1x102x180xf32>
    tpu.vector_store %arg5[%c0_10, %c0_11, %c0_12, %c0_13], %10 {strides = array<i32>} : memref<1x1x102x180xf32, #tpu.memory_space<vmem>>, vector<1x1x102x180xf32>,
    %c0_14 = arith.constant 0 : index
    %c1 = arith.constant 1 : index
    %c0_15 = arith.constant 0 : index
    %c0_16 = arith.constant 0 : index
    %11 = vector.load %arg3[%c0_14, %c1, %c0_15, %c0_16] : memref<1x4x102x144xf32, #tpu.memory_space<vmem>>, vector<1x1x102x144xf32>
    %12 = vector.shape_cast %11 : vector<1x1x102x144xf32> to vector<102x144xf32>
    %cst_17 = arith.constant dense<0.000000e+00> : vector<102x16xf32>
    %13 = tpu.matmul %12, %1, %cst_17 {dimension_numbers = #tpu.dot_dimension_numbers<[1], [0], [0], [1], [0, 0, 1, 1], [], []>} : vector<102x144xf32>, vector<144x16xf32>, vector<102x16xf32> -> vector<102x16xf32>
    %c1_18 = arith.constant 1 : index
    %c0_19 = arith.constant 0 : index
    %c0_20 = arith.constant 0 : index
    %14 = vector.load %arg4[%c1_18, %c0_19, %c0_20] : memref<4x16x180xf32, #tpu.memory_space<vmem>>, vector<1x16x180xf32>
    %15 = vector.shape_cast %14 : vector<1x16x180xf32> to vector<16x180xf32>
    %cst_21 = arith.constant dense<0.000000e+00> : vector<102x180xf32>
    %16 = tpu.matmul %13, %15, %cst_21 {dimension_numbers = #tpu.dot_dimension_numbers<[1], [0], [0], [1], [0, 0, 1, 1], [], []>} : vector<102x16xf32>, vector<16x180xf32>, vector<102x180xf32> -> vector<102x180xf32>
    %c0_22 = arith.constant 0 : index
    %c0_23 = arith.constant 0 : index
    %c0_24 = arith.constant 0 : index
    %c0_25 = arith.constant 0 : index
    %17 = vector.load %arg5[%c0_22, %c0_23, %c0_24, %c0_25] : memref<1x1x102x180xf32, #tpu.memory_space<vmem>>, vector<1x1x102x180xf32>
    %18 = vector.shape_cast %17 : vector<1x1x102x180xf32> to vector<102x180xf32>
    %19 = arith.addf %18, %16 : vector<102x180xf32>
    %c0_26 = arith.constant 0 : index
    %c0_27 = arith.constant 0 : index
    %c0_28 = arith.constant 0 : index
    %c0_29 = arith.constant 0 : index
    %20 = vector.load %arg5[%c0_26, %c0_27, %c0_28, %c0_29] : memref<1x1x102x180xf32, #tpu.memory_space<vmem>>, vector<1x1x102x180xf32>
    %21 = vector.shape_cast %20 : vector<1x1x102x180xf32> to vector<102x180xf32>
    %22 = vector.shape_cast %19 : vector<102x180xf32> to vector<1x1x102x180xf32>
    tpu.vector_store %arg5[%c0_26, %c0_27, %c0_28, %c0_29], %22 {strides = array<i32>} : memref<1x1x102x180xf32, #tpu.memory_space<vmem>>, vector<1x1x102x180xf32>,
    %c0_30 = arith.constant 0 : index
    %c2 = arith.constant 2 : index
    %c0_31 = arith.constant 0 : index
    %c0_32 = arith.constant 0 : index
    %23 = vector.load %arg3[%c0_30, %c2, %c0_31, %c0_32] : memref<1x4x102x144xf32, #tpu.memory_space<vmem>>, vector<1x1x102x144xf32>
    %24 = vector.shape_cast %23 : vector<1x1x102x144xf32> to vector<102x144xf32>
    %cst_33 = arith.constant dense<0.000000e+00> : vector<102x16xf32>
    %25 = tpu.matmul %24, %1, %cst_33 {dimension_numbers = #tpu.dot_dimension_numbers<[1], [0], [0], [1], [0, 0, 1, 1], [], []>} : vector<102x144xf32>, vector<144x16xf32>, vector<102x16xf32> -> vector<102x16xf32>
    %c2_34 = arith.constant 2 : index
    %c0_35 = arith.constant 0 : index
    %c0_36 = arith.constant 0 : index
    %26 = vector.load %arg4[%c2_34, %c0_35, %c0_36] : memref<4x16x180xf32, #tpu.memory_space<vmem>>, vector<1x16x180xf32>
    %27 = vector.shape_cast %26 : vector<1x16x180xf32> to vector<16x180xf32>
    %cst_37 = arith.constant dense<0.000000e+00> : vector<102x180xf32>
    %28 = tpu.matmul %25, %27, %cst_37 {dimension_numbers = #tpu.dot_dimension_numbers<[1], [0], [0], [1], [0, 0, 1, 1], [], []>} : vector<102x16xf32>, vector<16x180xf32>, vector<102x180xf32> -> vector<102x180xf32>
    %c0_38 = arith.constant 0 : index
    %c0_39 = arith.constant 0 : index
    %c0_40 = arith.constant 0 : index
    %c0_41 = arith.constant 0 : index
    %29 = vector.load %arg5[%c0_38, %c0_39, %c0_40, %c0_41] : memref<1x1x102x180xf32, #tpu.memory_space<vmem>>, vector<1x1x102x180xf32>
    %30 = vector.shape_cast %29 : vector<1x1x102x180xf32> to vector<102x180xf32>
    %31 = arith.addf %30, %28 : vector<102x180xf32>
    %c0_42 = arith.constant 0 : index
    %c0_43 = arith.constant 0 : index
    %c0_44 = arith.constant 0 : index
    %c0_45 = arith.constant 0 : index
    %32 = vector.load %arg5[%c0_42, %c0_43, %c0_44, %c0_45] : memref<1x1x102x180xf32, #tpu.memory_space<vmem>>, vector<1x1x102x180xf32>
    %33 = vector.shape_cast %32 : vector<1x1x102x180xf32> to vector<102x180xf32>
    %34 = vector.shape_cast %31 : vector<102x180xf32> to vector<1x1x102x180xf32>
    tpu.vector_store %arg5[%c0_42, %c0_43, %c0_44, %c0_45], %34 {strides = array<i32>} : memref<1x1x102x180xf32, #tpu.memory_space<vmem>>, vector<1x1x102x180xf32>,
    %c0_46 = arith.constant 0 : index
    %c3 = arith.constant 3 : index
    %c0_47 = arith.constant 0 : index
    %c0_48 = arith.constant 0 : index
    %35 = vector.load %arg3[%c0_46, %c3, %c0_47, %c0_48] : memref<1x4x102x144xf32, #tpu.memory_space<vmem>>, vector<1x1x102x144xf32>
    %36 = vector.shape_cast %35 : vector<1x1x102x144xf32> to vector<102x144xf32>
    %cst_49 = arith.constant dense<0.000000e+00> : vector<102x16xf32>
    %37 = tpu.matmul %36, %1, %cst_49 {dimension_numbers = #tpu.dot_dimension_numbers<[1], [0], [0], [1], [0, 0, 1, 1], [], []>} : vector<102x144xf32>, vector<144x16xf32>, vector<102x16xf32> -> vector<102x16xf32>
    %c3_50 = arith.constant 3 : index
    %c0_51 = arith.constant 0 : index
    %c0_52 = arith.constant 0 : index
    %38 = vector.load %arg4[%c3_50, %c0_51, %c0_52] : memref<4x16x180xf32, #tpu.memory_space<vmem>>, vector<1x16x180xf32>
    %39 = vector.shape_cast %38 : vector<1x16x180xf32> to vector<16x180xf32>
    %cst_53 = arith.constant dense<0.000000e+00> : vector<102x180xf32>
    %40 = tpu.matmul %37, %39, %cst_53 {dimension_numbers = #tpu.dot_dimension_numbers<[1], [0], [0], [1], [0, 0, 1, 1], [], []>} : vector<102x16xf32>, vector<16x180xf32>, vector<102x180xf32> -> vector<102x180xf32>
    %c0_54 = arith.constant 0 : index
    %c0_55 = arith.constant 0 : index
    %c0_56 = arith.constant 0 : index
    %c0_57 = arith.constant 0 : index
    %41 = vector.load %arg5[%c0_54, %c0_55, %c0_56, %c0_57] : memref<1x1x102x180xf32, #tpu.memory_space<vmem>>, vector<1x1x102x180xf32>
    %42 = vector.shape_cast %41 : vector<1x1x102x180xf32> to vector<102x180xf32>
    %43 = arith.addf %42, %40 : vector<102x180xf32>
    %c0_58 = arith.constant 0 : index
    %c0_59 = arith.constant 0 : index
    %c0_60 = arith.constant 0 : index
    %c0_61 = arith.constant 0 : index
    %44 = vector.load %arg5[%c0_58, %c0_59, %c0_60, %c0_61] : memref<1x1x102x180xf32, #tpu.memory_space<vmem>>, vector<1x1x102x180xf32>
    %45 = vector.shape_cast %44 : vector<1x1x102x180xf32> to vector<102x180xf32>
    %46 = vector.shape_cast %43 : vector<102x180xf32> to vector<1x1x102x180xf32>
    tpu.vector_store %arg5[%c0_58, %c0_59, %c0_60, %c0_61], %46 {strides = array<i32>} : memref<1x1x102x180xf32, #tpu.memory_space<vmem>>, vector<1x1x102x180xf32>,
    return
  }
  func.func @transform_0(%arg0: i32, %arg1: i32) -> (i32, i32, i32) {
    %c0_i32 = arith.constant 0 : i32
    %c0_i32_0 = arith.constant 0 : i32
    %c0_i32_1 = arith.constant 0 : i32
    return %arg1, %c0_i32, %c0_i32_0 : i32, i32, i32
  }
  func.func @transform_1(%arg0: i32, %arg1: i32) -> (i32, i32, i32, i32) {
    %c0_i32 = arith.constant 0 : i32
    %c0_i32_0 = arith.constant 0 : i32
    %c0_i32_1 = arith.constant 0 : i32
    %c0_i32_2 = arith.constant 0 : i32
    return %arg0, %c0_i32, %c0_i32_0, %c0_i32_1 : i32, i32, i32, i32
  }
  func.func @transform_2(%arg0: i32, %arg1: i32) -> (i32, i32, i32) {
    %c0_i32 = arith.constant 0 : i32
    %c0_i32_0 = arith.constant 0 : i32
    %c0_i32_1 = arith.constant 0 : i32
    %c0_i32_2 = arith.constant 0 : i32
    return %c0_i32, %c0_i32_0, %c0_i32_1 : i32, i32, i32
  }
  func.func @transform_3(%arg0: i32, %arg1: i32) -> (i32, i32, i32, i32) {
    %c0_i32 = arith.constant 0 : i32
    %c0_i32_0 = arith.constant 0 : i32
    %c0_i32_1 = arith.constant 0 : i32
    return %arg1, %arg0, %c0_i32, %c0_i32_0 : i32, i32, i32, i32
  }
}

</mosaic_0001>

<llo_original>
// kernel: decoder_forward.1
$region0: #{decoder_forward.1}
  #allocation0 [shape = 'u32[]', space=smem, size = 0x4, offset = 0x4, fixed_abs, tag = 'smem constant byte address 0x4 - core index']
  #allocation1 [shape = 'u32[72,128]{1,0:T(1,128)}', space=vmem, size = 0x9000, scoped, tag = 'internal scratch']
  %s0 = inlined_call_operand.vmem [shape: f32[2,144,16], index: 0, kind: input, shape index: {}]
  %s1 = inlined_call_operand.vmem [shape: f32[3,4,102,144], index: 1, kind: input, shape index: {}]
  %s2 = inlined_call_operand.vmem [shape: f32[4,16,180], index: 2, kind: input, shape index: {}]
  %s3 = inlined_call_operand.vmem [shape: f32[2,3,102,180], index: 3, kind: output, shape index: {}]
  %s4 = sld [smem:[#allocation0]]
  $region45: #{decoder_forward.1} parent=0
    _
  %s6 = ssub.s32 1, %s4
  %s7 = scalar_select 0, %s6, %s4
  loop: start=0, step=1, limit=8
  $region2: #{decoder_forward.1} parent=0 // loop_pre_header
    _
  $region3: #{decoder_forward.1} parent=0 // loop_header
    %s9 = sphi 0, %s13
    %p10 = scmp.ge.s32.totalorder %s9, 8
    %s16 = sphi 0, %s28
    %s17 = sphi 0, %s24
    %s18 = sphi 0, %s16
    %s19 = sphi 0, %s17
    %s20 = sphi 0, %s18
    %s21 = sphi 0, %s19
    %s31 = sphi 0, %s33
    %s34 = sphi 0, %s31
    %s35 = sphi 0, %s34
    %s51 = sphi 0, %s35
    %s57 = sphi 0, %s59
    %s60 = sphi 0, %s57
    %s61 = sphi 0, %s60
    %s77 = sphi 0, %s61
    %s81 = sphi 0, %s81
    %s83 = sphi 0, %s81
    %s84 = sphi 0, %s83
    %s98 = sphi 0, %s84
    %s106 = sphi 0, %s108
    %s109 = sphi 0, %s106
    %s110 = sphi 0, %s109
    %s126 = sphi 0, %s110
  $region4: #{decoder_forward.1} parent=0 // loop_header_branch
    %12 = sbr.rel (%p10) target = $region8
  $region5: #{decoder_forward.1} parent=0 // loop_body
    %s14 = ssub.s32 %s9, 1
    %s15 = ssub.s32 %s9, 2
    %s22 = sadd.s32 1, %s17
    %p23 = scmp.ge.s32.totalorder %s22, 2
    %s24 = scalar_select %p23, 0, %s22
    %s25 = sadd.s32 1, %s16
    %s26 = scalar_select %p23, %s25, %s16
    %p27 = scmp.ge.s32.totalorder %s26, 3
    %s28 = scalar_select %p27, 0, %s26
    %s29 = ssub.s32 %s17, %s24
    %p30 = scmp.eq.s32.totalorder %s29, 0
    %s32 = sadd.s32 %s31, 1
    %s33 = scalar_select %p30, %s31, %s32
    %p36 = pneg %p30
    %p37 = scmp.eq.s32.totalorder %s9, 5
    %p38 = por %p36, %p37
    %p39 = scmp.ne.s32.totalorder %s31, %s34
    %p40 = scmp.eq.s32.totalorder %s9, 0
    %p41 = por %p39, %p40
    %p42 = scmp.ne.s32.totalorder %s31, %s34
    %p43 = scmp.eq.s32.totalorder %s14, 5
    %p44 = por %p42, %p43
    %p45 = scmp.ne.s32.totalorder %s34, %s35
    %p46 = scmp.eq.s32.totalorder %s14, 0
    %p47 = por %p45, %p46
    %p48 = scmp.ne.s32.totalorder %s34, %s35
    %p49 = scmp.eq.s32.totalorder %s15, 5
    %p50 = por %p48, %p49
    %p52 = scmp.ne.s32.totalorder %s35, %s51
    %p53 = scmp.eq.s32.totalorder %s15, 0
    %p54 = por %p52, %p53
    %s55 = ssub.s32 %s16, %s28
    %p56 = scmp.eq.s32.totalorder %s55, 0
    %s58 = sadd.s32 %s57, 1
    %s59 = scalar_select %p56, %s57, %s58
    %p62 = pneg %p56
    %p63 = scmp.eq.s32.totalorder %s9, 5
    %p64 = por %p62, %p63
    %p65 = scmp.ne.s32.totalorder %s57, %s60
    %p66 = scmp.eq.s32.totalorder %s9, 0
    %p67 = por %p65, %p66
    %p68 = scmp.ne.s32.totalorder %s57, %s60
    %p69 = scmp.eq.s32.totalorder %s14, 5
    %p70 = por %p68, %p69
    %p71 = scmp.ne.s32.totalorder %s60, %s61
    %p72 = scmp.eq.s32.totalorder %s14, 0
    %p73 = por %p71, %p72
    %p74 = scmp.ne.s32.totalorder %s60, %s61
    %p75 = scmp.eq.s32.totalorder %s15, 5
    %p76 = por %p74, %p75
    %p78 = scmp.ne.s32.totalorder %s61, %s77
    %p79 = scmp.eq.s32.totalorder %s15, 0
    %p80 = por %p78, %p79
    %s82 = sadd.s32 %s81, 1
    %p85 = scmp.eq.s32.totalorder %s9, 5
    %p86 = scmp.ne.s32.totalorder %s81, %s83
    %p87 = scmp.eq.s32.totalorder %s9, 0
    %p88 = por %p86, %p87
    %p89 = scmp.ne.s32.totalorder %s81, %s83
    %p90 = scmp.eq.s32.totalorder %s14, 5
    %p91 = por %p89, %p90
    %p92 = scmp.ne.s32.totalorder %s83, %s84
    %p93 = scmp.eq.s32.totalorder %s14, 0
    %p94 = por %p92, %p93
    %p95 = scmp.ne.s32.totalorder %s83, %s84
    %p96 = scmp.eq.s32.totalorder %s15, 5
    %p97 = por %p95, %p96
    %p99 = scmp.ne.s32.totalorder %s84, %s98
    %p100 = scmp.eq.s32.totalorder %s15, 0
    %p101 = por %p99, %p100
    %s102 = ssub.s32 %s17, %s24
    %s103 = ssub.s32 %s16, %s28
    %s104 = sor.u32 %s102, %s103
    %p105 = scmp.eq.s32.totalorder %s104, 0
    %s107 = sadd.s32 %s106, 1
    %s108 = scalar_select %p105, %s106, %s107
    %p111 = pneg %p105
    %p112 = scmp.eq.s32.totalorder %s9, 5
    %p113 = por %p111, %p112
    %p114 = scmp.ne.s32.totalorder %s106, %s109
    %p115 = scmp.eq.s32.totalorder %s9, 0
    %p116 = por %p114, %p115
    %p117 = scmp.ne.s32.totalorder %s106, %s109
    %p118 = scmp.eq.s32.totalorder %s14, 5
    %p119 = por %p117, %p118
    %p120 = scmp.ne.s32.totalorder %s109, %s110
    %p121 = scmp.eq.s32.totalorder %s14, 0
    %p122 = por %p120, %p121
    %p123 = scmp.ne.s32.totalorder %s109, %s110
    %p124 = scmp.eq.s32.totalorder %s15, 5
    %p125 = por %p123, %p124
    %p127 = scmp.ne.s32.totalorder %s110, %s126
    %p128 = scmp.eq.s32.totalorder %s15, 0
    %p129 = por %p127, %p128
    %p130 = scmp.le.s32.totalorder 1, %s9
    %p131 = scmp.lt.s32.totalorder %s9, 7
    %p132 = pnand %p130, %p131
    %p133 = pneg %p132
    // Predicated region
    $region9: #{decoder_forward.1} parent=5 // pred_check
      _
    $region10: #{decoder_forward.1} parent=5 // pred_check_branch
      %135 = sbr.rel (%p132) target = $region12
    $region11: #{decoder_forward.1} parent=5 // pred_region
      %s136 = ssub.s32 %s9, 1
      // Predicated region
      $region13: #{decoder_forward.1} parent=11 // pred_check
        %p137 = pneg %p94
      $region14: #{decoder_forward.1} parent=11 // pred_check_branch
        %139 = sbr.rel (%p137) target = $region16
      $region15: #{decoder_forward.1} parent=11 // pred_region
        _
      $region16: #{decoder_forward.1} parent=11 // pred_fallthru
        _
    $region12: #{decoder_forward.1} parent=5 // pred_fallthru
      _
    %p140 = scmp.lt.s32.totalorder %s9, 6
    // Predicated region
    $region17: #{decoder_forward.1} parent=5 // pred_check
      %p141 = pneg %p140
    $region18: #{decoder_forward.1} parent=5 // pred_check_branch
      %143 = sbr.rel (%p141) target = $region20
    $region19: #{decoder_forward.1} parent=5 // pred_region
      // Predicated region
      $region21: #{decoder_forward.1} parent=19 // pred_check
        %p144 = pneg %p41
      $region22: #{decoder_forward.1} parent=19 // pred_check_branch
        %146 = sbr.rel (%p144) target = $region24
      $region23: #{decoder_forward.1} parent=19 // pred_region
        %p147 = scmp.lt.s32.totalorder %s17, 1
        %s148 = scalar_select %p147, %s17, 1
        %s149 = smul.addr %s148, 18
        %s150 = smul.addr %s149, 8
        %s151 = scalar_lea.vmem %s0, %s150
      $region24: #{decoder_forward.1} parent=19 // pred_fallthru
        _
      // Predicated region
      $region25: #{decoder_forward.1} parent=19 // pred_check
        %p152 = pneg %p67
      $region26: #{decoder_forward.1} parent=19 // pred_check_branch
        %154 = sbr.rel (%p152) target = $region28
      $region27: #{decoder_forward.1} parent=19 // pred_region
        %p155 = scmp.lt.s32.totalorder %s16, 2
        %s156 = scalar_select %p155, %s16, 2
        %s157 = smul.addr %s156, 104
        %s158 = smul.addr %s157, 8
        %s159 = scalar_lea.vmem %s1, %s158
      $region28: #{decoder_forward.1} parent=19 // pred_fallthru
        _
    $region20: #{decoder_forward.1} parent=5 // pred_fallthru
      _
    %p160 = scmp.le.s32.totalorder 1, %s9
    %p161 = scmp.lt.s32.totalorder %s9, 7
    %p162 = pnand %p160, %p161
    %p163 = pneg %p162
    // Predicated region
    $region29: #{decoder_forward.1} parent=5 // pred_check
      _
    $region30: #{decoder_forward.1} parent=5 // pred_check_branch
      %165 = sbr.rel (%p162) target = $region32
    $region31: #{decoder_forward.1} parent=5 // pred_region
      %s166 = ssub.s32 %s9, 1
      %p167 = scmp.lt.s32.totalorder %s19, 1
      %s168 = scalar_select %p167, %s19, 1
      %s169 = smul.addr %s168, 18
      %s170 = smul.addr %s169, 8
      %s171 = scalar_lea.vmem %s0, %s170
      %p172 = pneg %p47
      %p173 = pneg %p44
      %p174 = scmp.lt.s32.totalorder %s18, 2
      %s175 = scalar_select %p174, %s18, 2
      %s176 = smul.addr %s175, 104
      %s177 = smul.addr %s176, 8
      %s178 = scalar_lea.vmem %s1, %s177
      %p179 = pneg %p73
      %p180 = pneg %p70
      %p181 = pneg %p94
      %p182 = pneg %p91
      %p183 = pneg %p122
      %p184 = pneg %p119
      %p185 = scmp.lt.s32.totalorder %s19, 1
      %s186 = scalar_select %p185, %s19, 1
      %p187 = scmp.lt.s32.totalorder %s18, 2
      %s188 = scalar_select %p187, %s18, 2
      %s189 = smul.addr %s188, 26
      %s190 = smul.addr %s186, 78
      %s191 = sadd.s32 %s189, %s190
      %s192 = smul.addr %s191, 8
      %s193 = scalar_lea.vmem %s3, %s192
      %p194 = scmp.lt.s32.totalorder %s19, 1
      %s195 = scalar_select %p194, %s19, 1
      %s196 = smul.addr %s195, 18
      %s197 = smul.addr %s196, 8
      %s198 = scalar_lea.vmem %s0, %s197
      %p199 = scmp.lt.s32.totalorder %s18, 2
      %s200 = scalar_select %p199, %s18, 2
      %s201 = smul.addr %s200, 104
      %s202 = smul.addr %s201, 8
      %s203 = scalar_lea.vmem %s1, %s202
      %p204 = scmp.lt.s32.totalorder %s19, 1
      %s205 = scalar_select %p204, %s19, 1
      %p206 = scmp.lt.s32.totalorder %s18, 2
      %s207 = scalar_select %p206, %s18, 2
      %s208 = smul.addr %s207, 26
      %s209 = smul.addr %s205, 78
      %s210 = sadd.s32 %s208, %s209
      %s211 = smul.addr %s210, 8
      %s212 = scalar_lea.vmem %s3, %s211
      %v213 = vld [vmem:[%s198] sm:$0xff]
      %v214 = vld [vmem:[%s198 + $0x8] sm:$0xff]
      %v215 = vld [vmem:[%s198 + $0x10] sm:$0xff]
      %v216 = vld [vmem:[%s198 + $0x18] sm:$0xff]
      %v217 = vld [vmem:[%s198 + $0x20] sm:$0xff]
      %v218 = vld [vmem:[%s198 + $0x28] sm:$0xff]
      %v219 = vld [vmem:[%s198 + $0x30] sm:$0xff]
      %v220 = vld [vmem:[%s198 + $0x38] sm:$0xff]
      %v221 = vld [vmem:[%s198 + $0x40] sm:$0xff]
      %v222 = vld [vmem:[%s198 + $0x48] sm:$0xff]
      %v223 = vld [vmem:[%s198 + $0x50] sm:$0xff]
      %v224 = vld [vmem:[%s198 + $0x58] sm:$0xff]
      %v225 = vld [vmem:[%s198 + $0x60] sm:$0xff]
      %v226 = vld [vmem:[%s198 + $0x68] sm:$0xff]
      %v227 = vld [vmem:[%s198 + $0x70] sm:$0xff]
      %v228 = vld [vmem:[%s198 + $0x78] sm:$0xff]
      %v229 = vld [vmem:[%s198 + $0x80] sm:$0xff]
      %v230 = vld [vmem:[%s198 + $0x88] sm:$0xff]
      %v231 = vld [vmem:[%s203] sm:$0xff]
      %v232 = vld [vmem:[%s203 + $0x8] sm:$0xff]
      %v233 = vld [vmem:[%s203 + $0x10] sm:$0xff]
      %v234 = vld [vmem:[%s203 + $0x18] sm:$0xff]
      %v235 = vld [vmem:[%s203 + $0x20] sm:$0xff]
      %v236 = vld [vmem:[%s203 + $0x28] sm:$0xff]
      %v237 = vld [vmem:[%s203 + $0x30] sm:$0xff]
      %v238 = vld [vmem:[%s203 + $0x38] sm:$0xff]
      %v239 = vld [vmem:[%s203 + $0x40] sm:$0xff]
      %v240 = vld [vmem:[%s203 + $0x48] sm:$0xff]
      %v241 = vld [vmem:[%s203 + $0x50] sm:$0xff]
      %v242 = vld [vmem:[%s203 + $0x58] sm:$0xff]
      %v243 = vld [vmem:[%s203 + $0x60] sm:$0xff]
      %v244 = vld [vmem:[%s203 + $0x68] sm:$0xff]
      %v245 = vld [vmem:[%s203 + $0x70] sm:$0xff]
      %v246 = vld [vmem:[%s203 + $0x78] sm:$0xff]
      %v247 = vld [vmem:[%s203 + $0x80] sm:$0xff]
      %v248 = vld [vmem:[%s203 + $0x88] sm:$0xff]
      %v249 = vld [vmem:[%s203 + $0x90] sm:$0xff]
      %v250 = vld [vmem:[%s203 + $0x98] sm:$0xff]
      %v251 = vld [vmem:[%s203 + $0xa0] sm:$0xff]
      %v252 = vld [vmem:[%s203 + $0xa8] sm:$0xff]
      %v253 = vld [vmem:[%s203 + $0xb0] sm:$0xff]
      %v254 = vld [vmem:[%s203 + $0xb8] sm:$0xff]
      %v255 = vld [vmem:[%s203 + $0xc0] sm:$0x3f]
      %v256 = vld [vmem:[%s203 + $0xc8] sm:$0x3f]
      %vm257 = vcmask 130048
      %v259 = vsel %vm257, %v232, 0
      %v262 = vsel %vm257, %v234, 0
      %v265 = vsel %vm257, %v236, 0
      %v268 = vsel %vm257, %v238, 0
      %v271 = vsel %vm257, %v240, 0
      %v274 = vsel %vm257, %v242, 0
      %v277 = vsel %vm257, %v244, 0
      %v280 = vsel %vm257, %v246, 0
      %v283 = vsel %vm257, %v248, 0
      %v286 = vsel %vm257, %v250, 0
      %v289 = vsel %vm257, %v252, 0
      %v292 = vsel %vm257, %v254, 0
      %v295 = vsel %vm257, %v256, 0
      %297 = vmatpush.msra.mxu0 %v228
      %298 = vmatpush.msra.mxu0 %v227
      %299 = vmatpush.msra.mxu0 %v226
      %300 = vmatpush.msra.mxu0 %v225
      %301 = vmatpush.msra.mxu0 %v224
      %302 = vmatpush.msra.mxu0 %v223
      %303 = vmatpush.msra.mxu0 %v222
      %304 = vmatpush.msra.mxu0 %v221
      %305 = vmatpush.msra.mxu0 %v220
      %306 = vmatpush.msra.mxu0 %v219
      %307 = vmatpush.msra.mxu0 %v218
      %308 = vmatpush.msra.mxu0 %v217
      %309 = vmatpush.msra.mxu0 %v216
      %310 = vmatpush.msra.mxu0 %v215
      %311 = vmatpush.msra.mxu0 %v214
      %312 = vmatpush.msra.mxu0 %v213
      %313 = vmatmul.f32.gmra.mxu0 %v231
      %v314 = vpop.f32.mrf.mxu0
      %v315 = vadd.f32 0.0, %v314
      %316 = vmatmul.f32.gmra.mxu0 %v233
      %v317 = vpop.f32.mrf.mxu0
      %v318 = vadd.f32 0.0, %v317
      %319 = vmatmul.f32.gmra.mxu0 %v235
      %v320 = vpop.f32.mrf.mxu0
      %v321 = vadd.f32 0.0, %v320
      %322 = vmatmul.f32.gmra.mxu0 %v237
      %v323 = vpop.f32.mrf.mxu0
      %v324 = vadd.f32 0.0, %v323
      %325 = vmatmul.f32.gmra.mxu0 %v239
      %v326 = vpop.f32.mrf.mxu0
      %v327 = vadd.f32 0.0, %v326
      %328 = vmatmul.f32.gmra.mxu0 %v241
      %v329 = vpop.f32.mrf.mxu0
      %v330 = vadd.f32 0.0, %v329
      %331 = vmatmul.f32.gmra.mxu0 %v243
      %v332 = vpop.f32.mrf.mxu0
      %v333 = vadd.f32 0.0, %v332
      %334 = vmatmul.f32.gmra.mxu0 %v245
      %v335 = vpop.f32.mrf.mxu0
      %v336 = vadd.f32 0.0, %v335
      %337 = vmatmul.f32.gmra.mxu0 %v247
      %v338 = vpop.f32.mrf.mxu0
      %v339 = vadd.f32 0.0, %v338
      %340 = vmatmul.f32.gmra.mxu0 %v249
      %v341 = vpop.f32.mrf.mxu0
      %v342 = vadd.f32 0.0, %v341
      %343 = vmatmul.f32.gmra.mxu0 %v251
      %v344 = vpop.f32.mrf.mxu0
      %v345 = vadd.f32 0.0, %v344
      %346 = vmatmul.f32.gmra.mxu0 %v253
      %v347 = vpop.f32.mrf.mxu0
      %v348 = vadd.f32 0.0, %v347
      %349 = vmatmul.f32.gmra.mxu0 %v255
      %v350 = vpop.f32.mrf.mxu0
      %v351 = vadd.f32 0.0, %v350
      %352 = vdwg.mxu0
      %353 = vmatpush.msra.mxu0 0.0
      %354 = vmatpush.msra.mxu0 0.0
      %355 = vmatpush.msra.mxu0 0.0
      %356 = vmatpush.msra.mxu0 0.0
      %357 = vmatpush.msra.mxu0 0.0
      %358 = vmatpush.msra.mxu0 0.0
      %359 = vmatpush.msra.mxu0 0.0
      %360 = vmatpush.msra.mxu0 0.0
      %361 = vmatpush.msra.mxu0 0.0
      %362 = vmatpush.msra.mxu0 0.0
      %363 = vmatpush.msra.mxu0 0.0
      %364 = vmatpush.msra.mxu0 0.0
      %365 = vmatpush.msra.mxu0 0.0
      %366 = vmatpush.msra.mxu0 0.0
      %367 = vmatpush.msra.mxu0 %v230
      %368 = vmatpush.msra.mxu0 %v229
      %369 = vmatmul.f32.gmra.mxu0 %v259
      %v370 = vpop.f32.mrf.mxu0
      %v371 = vadd.f32 %v315, %v370
      %372 = vmatmul.f32.gmra.mxu0 %v262
      %v373 = vpop.f32.mrf.mxu0
      %v374 = vadd.f32 %v318, %v373
      %375 = vmatmul.f32.gmra.mxu0 %v265
      %v376 = vpop.f32.mrf.mxu0
      %v377 = vadd.f32 %v321, %v376
      %378 = vmatmul.f32.gmra.mxu0 %v268
      %v379 = vpop.f32.mrf.mxu0
      %v380 = vadd.f32 %v324, %v379
      %381 = vmatmul.f32.gmra.mxu0 %v271
      %v382 = vpop.f32.mrf.mxu0
      %v383 = vadd.f32 %v327, %v382
      %384 = vmatmul.f32.gmra.mxu0 %v274
      %v385 = vpop.f32.mrf.mxu0
      %v386 = vadd.f32 %v330, %v385
      %387 = vmatmul.f32.gmra.mxu0 %v277
      %v388 = vpop.f32.mrf.mxu0
      %v389 = vadd.f32 %v333, %v388
      %390 = vmatmul.f32.gmra.mxu0 %v280
      %v391 = vpop.f32.mrf.mxu0
      %v392 = vadd.f32 %v336, %v391
      %393 = vmatmul.f32.gmra.mxu0 %v283
      %v394 = vpop.f32.mrf.mxu0
      %v395 = vadd.f32 %v339, %v394
      %396 = vmatmul.f32.gmra.mxu0 %v286
      %v397 = vpop.f32.mrf.mxu0
      %v398 = vadd.f32 %v342, %v397
      %399 = vmatmul.f32.gmra.mxu0 %v289
      %v400 = vpop.f32.mrf.mxu0
      %v401 = vadd.f32 %v345, %v400
      %402 = vmatmul.f32.gmra.mxu0 %v292
      %v403 = vpop.f32.mrf.mxu0
      %v404 = vadd.f32 %v348, %v403
      %405 = vmatmul.f32.gmra.mxu0 %v295
      %v406 = vpop.f32.mrf.mxu0
      %v407 = vadd.f32 %v351, %v406
      %408 = vdwg.mxu0
      %v409 = vld [vmem:[%s2] sm:$0xff]
      %v410 = vld [vmem:[%s2 + $0x8] sm:$0xff]
      %v411 = vld [vmem:[%s2 + $0x10] sm:$0xff]
      %v412 = vld [vmem:[%s2 + $0x18] sm:$0xff]
      %v414 = vsel %vm257, %v371, 0
      %v417 = vsel %vm257, %v374, 0
      %v420 = vsel %vm257, %v377, 0
      %v423 = vsel %vm257, %v380, 0
      %v426 = vsel %vm257, %v383, 0
      %v429 = vsel %vm257, %v386, 0
      %v432 = vsel %vm257, %v389, 0
      %v435 = vsel %vm257, %v392, 0
      %v438 = vsel %vm257, %v395, 0
      %v441 = vsel %vm257, %v398, 0
      %v444 = vsel %vm257, %v401, 0
      %v447 = vsel %vm257, %v404, 0
      %v450 = vsel %vm257, %v407, 0
      %452 = vmatpush.msra.mxu0 0.0
      %453 = vmatpush.msra.mxu0 0.0
      %454 = vmatpush.msra.mxu0 0.0
      %455 = vmatpush.msra.mxu0 0.0
      %456 = vmatpush.msra.mxu0 0.0
      %457 = vmatpush.msra.mxu0 0.0
      %458 = vmatpush.msra.mxu0 0.0
      %459 = vmatpush.msra.mxu0 0.0
      %460 = vmatpush.msra.mxu0 0.0
      %461 = vmatpush.msra.mxu0 0.0
      %462 = vmatpush.msra.mxu0 0.0
      %463 = vmatpush.msra.mxu0 0.0
      %464 = vmatpush.msra.mxu0 0.0
      %465 = vmatpush.msra.mxu0 0.0
      %466 = vmatpush.msra.mxu0 %v411
      %467 = vmatpush.msra.mxu0 %v409
      %468 = vmatmul.f32.gmra.mxu0 %v414
      %v469 = vpop.f32.mrf.mxu0
      %v470 = vadd.f32 0.0, %v469
      %471 = vmatmul.f32.gmra.mxu0 %v417
      %v472 = vpop.f32.mrf.mxu0
      %v473 = vadd.f32 0.0, %v472
      %474 = vmatmul.f32.gmra.mxu0 %v420
      %v475 = vpop.f32.mrf.mxu0
      %v476 = vadd.f32 0.0, %v475
      %477 = vmatmul.f32.gmra.mxu0 %v423
      %v478 = vpop.f32.mrf.mxu0
      %v479 = vadd.f32 0.0, %v478
      %480 = vmatmul.f32.gmra.mxu0 %v426
      %v481 = vpop.f32.mrf.mxu0
      %v482 = vadd.f32 0.0, %v481
      %483 = vmatmul.f32.gmra.mxu0 %v429
      %v484 = vpop.f32.mrf.mxu0
      %v485 = vadd.f32 0.0, %v484
      %486 = vmatmul.f32.gmra.mxu0 %v432
      %v487 = vpop.f32.mrf.mxu0
      %v488 = vadd.f32 0.0, %v487
      %489 = vmatmul.f32.gmra.mxu0 %v435
      %v490 = vpop.f32.mrf.mxu0
      %v491 = vadd.f32 0.0, %v490
      %492 = vmatmul.f32.gmra.mxu0 %v438
      %v493 = vpop.f32.mrf.mxu0
      %v494 = vadd.f32 0.0, %v493
      %495 = vmatmul.f32.gmra.mxu0 %v441
      %v496 = vpop.f32.mrf.mxu0
      %v497 = vadd.f32 0.0, %v496
      %498 = vmatmul.f32.gmra.mxu0 %v444
      %v499 = vpop.f32.mrf.mxu0
      %v500 = vadd.f32 0.0, %v499
      %501 = vmatmul.f32.gmra.mxu0 %v447
      %v502 = vpop.f32.mrf.mxu0
      %v503 = vadd.f32 0.0, %v502
      %504 = vmatmul.f32.gmra.mxu0 %v450
      %v505 = vpop.f32.mrf.mxu0
      %v506 = vadd.f32 0.0, %v505
      %507 = vdwg.mxu0
      %508 = vmatpush.msra.mxu0 0.0
      %509 = vmatpush.msra.mxu0 0.0
      %510 = vmatpush.msra.mxu0 0.0
      %511 = vmatpush.msra.mxu0 0.0
      %512 = vmatpush.msra.mxu0 0.0
      %513 = vmatpush.msra.mxu0 0.0
      %514 = vmatpush.msra.mxu0 0.0
      %515 = vmatpush.msra.mxu0 0.0
      %516 = vmatpush.msra.mxu0 0.0
      %517 = vmatpush.msra.mxu0 0.0
      %518 = vmatpush.msra.mxu0 0.0
      %519 = vmatpush.msra.mxu0 0.0
      %520 = vmatpush.msra.mxu0 0.0
      %521 = vmatpush.msra.mxu0 0.0
      %522 = vmatpush.msra.mxu0 %v412
      %523 = vmatpush.msra.mxu0 %v410
      %524 = vmatmul.f32.gmra.mxu0 %v414
      %v525 = vpop.f32.mrf.mxu0
      %v526 = vadd.f32 0.0, %v525
      %527 = vmatmul.f32.gmra.mxu0 %v417
      %v528 = vpop.f32.mrf.mxu0
      %v529 = vadd.f32 0.0, %v528
      %530 = vmatmul.f32.gmra.mxu0 %v420
      %v531 = vpop.f32.mrf.mxu0
      %v532 = vadd.f32 0.0, %v531
      %533 = vmatmul.f32.gmra.mxu0 %v423
      %v534 = vpop.f32.mrf.mxu0
      %v535 = vadd.f32 0.0, %v534
      %536 = vmatmul.f32.gmra.mxu0 %v426
      %v537 = vpop.f32.mrf.mxu0
      %v538 = vadd.f32 0.0, %v537
      %539 = vmatmul.f32.gmra.mxu0 %v429
      %v540 = vpop.f32.mrf.mxu0
      %v541 = vadd.f32 0.0, %v540
      %542 = vmatmul.f32.gmra.mxu0 %v432
      %v543 = vpop.f32.mrf.mxu0
      %v544 = vadd.f32 0.0, %v543
      %545 = vmatmul.f32.gmra.mxu0 %v435
      %v546 = vpop.f32.mrf.mxu0
      %v547 = vadd.f32 0.0, %v546
      %548 = vmatmul.f32.gmra.mxu0 %v438
      %v549 = vpop.f32.mrf.mxu0
      %v550 = vadd.f32 0.0, %v549
      %551 = vmatmul.f32.gmra.mxu0 %v441
      %v552 = vpop.f32.mrf.mxu0
      %v553 = vadd.f32 0.0, %v552
      %554 = vmatmul.f32.gmra.mxu0 %v444
      %v555 = vpop.f32.mrf.mxu0
      %v556 = vadd.f32 0.0, %v555
      %557 = vmatmul.f32.gmra.mxu0 %v447
      %v558 = vpop.f32.mrf.mxu0
      %v559 = vadd.f32 0.0, %v558
      %560 = vmatmul.f32.gmra.mxu0 %v450
      %v561 = vpop.f32.mrf.mxu0
      %v562 = vadd.f32 0.0, %v561
      %563 = vdwg.mxu0
      %564 = vst [vmem:[%s212] sm:$0xff] %v470
      %vm565 = vcmask 424960
      %566 = vst.msk [vmem:[%s212 + $0x8] sm:$0xff] %vm565, %v526
      %567 = vst [vmem:[%s212 + $0x10] sm:$0xff] %v473
      %568 = vst.msk [vmem:[%s212 + $0x18] sm:$0xff] %vm565, %v529
      %569 = vst [vmem:[%s212 + $0x20] sm:$0xff] %v476
      %570 = vst.msk [vmem:[%s212 + $0x28] sm:$0xff] %vm565, %v532
      %571 = vst [vmem:[%s212 + $0x30] sm:$0xff] %v479
      %572 = vst.msk [vmem:[%s212 + $0x38] sm:$0xff] %vm565, %v535
      %573 = vst [vmem:[%s212 + $0x40] sm:$0xff] %v482
      %574 = vst.msk [vmem:[%s212 + $0x48] sm:$0xff] %vm565, %v538
      %575 = vst [vmem:[%s212 + $0x50] sm:$0xff] %v485
      %576 = vst.msk [vmem:[%s212 + $0x58] sm:$0xff] %vm565, %v541
      %577 = vst [vmem:[%s212 + $0x60] sm:$0xff] %v488
      %578 = vst.msk [vmem:[%s212 + $0x68] sm:$0xff] %vm565, %v544
      %579 = vst [vmem:[%s212 + $0x70] sm:$0xff] %v491
      %580 = vst.msk [vmem:[%s212 + $0x78] sm:$0xff] %vm565, %v547
      %581 = vst [vmem:[%s212 + $0x80] sm:$0xff] %v494
      %582 = vst.msk [vmem:[%s212 + $0x88] sm:$0xff] %vm565, %v550
      %583 = vst [vmem:[%s212 + $0x90] sm:$0xff] %v497
      %584 = vst.msk [vmem:[%s212 + $0x98] sm:$0xff] %vm565, %v553
      %585 = vst [vmem:[%s212 + $0xa0] sm:$0xff] %v500
      %586 = vst.msk [vmem:[%s212 + $0xa8] sm:$0xff] %vm565, %v556
      %587 = vst [vmem:[%s212 + $0xb0] sm:$0xff] %v503
      %588 = vst.msk [vmem:[%s212 + $0xb8] sm:$0xff] %vm565, %v559
      %589 = vst [vmem:[%s212 + $0xc0] sm:$0x3f] %v506
      %vm590 = vcmask 422912
      %591 = vst.msk [vmem:[%s212 + $0xc8] sm:$0x3f] %vm590, %v562
      %s592 = scalar_lea.vmem %s203, 208
      %v593 = vld [vmem:[%s592] sm:$0xff]
      %v594 = vld [vmem:[%s592 + $0x8] sm:$0xff]
      %v595 = vld [vmem:[%s592 + $0x10] sm:$0xff]
      %v596 = vld [vmem:[%s592 + $0x18] sm:$0xff]
      %v597 = vld [vmem:[%s592 + $0x20] sm:$0xff]
      %v598 = vld [vmem:[%s592 + $0x28] sm:$0xff]
      %v599 = vld [vmem:[%s592 + $0x30] sm:$0xff]
      %v600 = vld [vmem:[%s592 + $0x38] sm:$0xff]
      %v601 = vld [vmem:[%s592 + $0x40] sm:$0xff]
      %v602 = vld [vmem:[%s592 + $0x48] sm:$0xff]
      %v603 = vld [vmem:[%s592 + $0x50] sm:$0xff]
      %v604 = vld [vmem:[%s592 + $0x58] sm:$0xff]
      %v605 = vld [vmem:[%s592 + $0x60] sm:$0xff]
      %v606 = vld [vmem:[%s592 + $0x68] sm:$0xff]
      %v607 = vld [vmem:[%s592 + $0x70] sm:$0xff]
      %v608 = vld [vmem:[%s592 + $0x78] sm:$0xff]
      %v609 = vld [vmem:[%s592 + $0x80] sm:$0xff]
      %v610 = vld [vmem:[%s592 + $0x88] sm:$0xff]
      %v611 = vld [vmem:[%s592 + $0x90] sm:$0xff]
      %v612 = vld [vmem:[%s592 + $0x98] sm:$0xff]
      %v613 = vld [vmem:[%s592 + $0xa0] sm:$0xff]
      %v614 = vld [vmem:[%s592 + $0xa8] sm:$0xff]
      %v615 = vld [vmem:[%s592 + $0xb0] sm:$0xff]
      %v616 = vld [vmem:[%s592 + $0xb8] sm:$0xff]
      %v617 = vld [vmem:[%s592 + $0xc0] sm:$0x3f]
      %v618 = vld [vmem:[%s592 + $0xc8] sm:$0x3f]
      %v620 = vsel %vm257, %v594, 0
      %v623 = vsel %vm257, %v596, 0
      %v626 = vsel %vm257, %v598, 0
      %v629 = vsel %vm257, %v600, 0
      %v632 = vsel %vm257, %v602, 0
      %v635 = vsel %vm257, %v604, 0
      %v638 = vsel %vm257, %v606, 0
      %v641 = vsel %vm257, %v608, 0
      %v644 = vsel %vm257, %v610, 0
      %v647 = vsel %vm257, %v612, 0
      %v650 = vsel %vm257, %v614, 0
      %v653 = vsel %vm257, %v616, 0
      %v656 = vsel %vm257, %v618, 0
      %658 = vmatpush.msra.mxu0 %v228
      %659 = vmatpush.msra.mxu0 %v227
      %660 = vmatpush.msra.mxu0 %v226
      %661 = vmatpush.msra.mxu0 %v225
      %662 = vmatpush.msra.mxu0 %v224
      %663 = vmatpush.msra.mxu0 %v223
      %664 = vmatpush.msra.mxu0 %v222
      %665 = vmatpush.msra.mxu0 %v221
      %666 = vmatpush.msra.mxu0 %v220
      %667 = vmatpush.msra.mxu0 %v219
      %668 = vmatpush.msra.mxu0 %v218
      %669 = vmatpush.msra.mxu0 %v217
      %670 = vmatpush.msra.mxu0 %v216
      %671 = vmatpush.msra.mxu0 %v215
      %672 = vmatpush.msra.mxu0 %v214
      %673 = vmatpush.msra.mxu0 %v213
      %674 = vmatmul.f32.gmra.mxu0 %v593
      %v675 = vpop.f32.mrf.mxu0
      %v676 = vadd.f32 0.0, %v675
      %677 = vmatmul.f32.gmra.mxu0 %v595
      %v678 = vpop.f32.mrf.mxu0
      %v679 = vadd.f32 0.0, %v678
      %680 = vmatmul.f32.gmra.mxu0 %v597
      %v681 = vpop.f32.mrf.mxu0
      %v682 = vadd.f32 0.0, %v681
      %683 = vmatmul.f32.gmra.mxu0 %v599
      %v684 = vpop.f32.mrf.mxu0
      %v685 = vadd.f32 0.0, %v684
      %686 = vmatmul.f32.gmra.mxu0 %v601
      %v687 = vpop.f32.mrf.mxu0
      %v688 = vadd.f32 0.0, %v687
      %689 = vmatmul.f32.gmra.mxu0 %v603
      %v690 = vpop.f32.mrf.mxu0
      %v691 = vadd.f32 0.0, %v690
      %692 = vmatmul.f32.gmra.mxu0 %v605
      %v693 = vpop.f32.mrf.mxu0
      %v694 = vadd.f32 0.0, %v693
      %695 = vmatmul.f32.gmra.mxu0 %v607
      %v696 = vpop.f32.mrf.mxu0
      %v697 = vadd.f32 0.0, %v696
      %698 = vmatmul.f32.gmra.mxu0 %v609
      %v699 = vpop.f32.mrf.mxu0
      %v700 = vadd.f32 0.0, %v699
      %701 = vmatmul.f32.gmra.mxu0 %v611
      %v702 = vpop.f32.mrf.mxu0
      %v703 = vadd.f32 0.0, %v702
      %704 = vmatmul.f32.gmra.mxu0 %v613
      %v705 = vpop.f32.mrf.mxu0
      %v706 = vadd.f32 0.0, %v705
      %707 = vmatmul.f32.gmra.mxu0 %v615
      %v708 = vpop.f32.mrf.mxu0
      %v709 = vadd.f32 0.0, %v708
      %710 = vmatmul.f32.gmra.mxu0 %v617
      %v711 = vpop.f32.mrf.mxu0
      %v712 = vadd.f32 0.0, %v711
      %713 = vdwg.mxu0
      %714 = vmatpush.msra.mxu0 0.0
      %715 = vmatpush.msra.mxu0 0.0
      %716 = vmatpush.msra.mxu0 0.0
      %717 = vmatpush.msra.mxu0 0.0
      %718 = vmatpush.msra.mxu0 0.0
      %719 = vmatpush.msra.mxu0 0.0
      %720 = vmatpush.msra.mxu0 0.0
      %721 = vmatpush.msra.mxu0 0.0
      %722 = vmatpush.msra.mxu0 0.0
      %723 = vmatpush.msra.mxu0 0.0
      %724 = vmatpush.msra.mxu0 0.0
      %725 = vmatpush.msra.mxu0 0.0
      %726 = vmatpush.msra.mxu0 0.0
      %727 = vmatpush.msra.mxu0 0.0
      %728 = vmatpush.msra.mxu0 %v230
      %729 = vmatpush.msra.mxu0 %v229
      %730 = vmatmul.f32.gmra.mxu0 %v620
      %v731 = vpop.f32.mrf.mxu0
      %v732 = vadd.f32 %v676, %v731
      %733 = vmatmul.f32.gmra.mxu0 %v623
      %v734 = vpop.f32.mrf.mxu0
      %v735 = vadd.f32 %v679, %v734
      %736 = vmatmul.f32.gmra.mxu0 %v626
      %v737 = vpop.f32.mrf.mxu0
      %v738 = vadd.f32 %v682, %v737
      %739 = vmatmul.f32.gmra.mxu0 %v629
      %v740 = vpop.f32.mrf.mxu0
      %v741 = vadd.f32 %v685, %v740
      %742 = vmatmul.f32.gmra.mxu0 %v632
      %v743 = vpop.f32.mrf.mxu0
      %v744 = vadd.f32 %v688, %v743
      %745 = vmatmul.f32.gmra.mxu0 %v635
      %v746 = vpop.f32.mrf.mxu0
      %v747 = vadd.f32 %v691, %v746
      %748 = vmatmul.f32.gmra.mxu0 %v638
      %v749 = vpop.f32.mrf.mxu0
      %v750 = vadd.f32 %v694, %v749
      %751 = vmatmul.f32.gmra.mxu0 %v641
      %v752 = vpop.f32.mrf.mxu0
      %v753 = vadd.f32 %v697, %v752
      %754 = vmatmul.f32.gmra.mxu0 %v644
      %v755 = vpop.f32.mrf.mxu0
      %v756 = vadd.f32 %v700, %v755
      %757 = vmatmul.f32.gmra.mxu0 %v647
      %v758 = vpop.f32.mrf.mxu0
      %v759 = vadd.f32 %v703, %v758
      %760 = vmatmul.f32.gmra.mxu0 %v650
      %v761 = vpop.f32.mrf.mxu0
      %v762 = vadd.f32 %v706, %v761
      %763 = vmatmul.f32.gmra.mxu0 %v653
      %v764 = vpop.f32.mrf.mxu0
      %v765 = vadd.f32 %v709, %v764
      %766 = vmatmul.f32.gmra.mxu0 %v656
      %v767 = vpop.f32.mrf.mxu0
      %v768 = vadd.f32 %v712, %v767
      %769 = vdwg.mxu0
      %s770 = scalar_lea.vmem %s2, 32
      %v771 = vld [vmem:[%s770] sm:$0xff]
      %v772 = vld [vmem:[%s770 + $0x8] sm:$0xff]
      %v773 = vld [vmem:[%s770 + $0x10] sm:$0xff]
      %v774 = vld [vmem:[%s770 + $0x18] sm:$0xff]
      %v776 = vsel %vm257, %v732, 0
      %v779 = vsel %vm257, %v735, 0
      %v782 = vsel %vm257, %v738, 0
      %v785 = vsel %vm257, %v741, 0
      %v788 = vsel %vm257, %v744, 0
      %v791 = vsel %vm257, %v747, 0
      %v794 = vsel %vm257, %v750, 0
      %v797 = vsel %vm257, %v753, 0
      %v800 = vsel %vm257, %v756, 0
      %v803 = vsel %vm257, %v759, 0
      %v806 = vsel %vm257, %v762, 0
      %v809 = vsel %vm257, %v765, 0
      %v812 = vsel %vm257, %v768, 0
      %814 = vmatpush.msra.mxu0 0.0
      %815 = vmatpush.msra.mxu0 0.0
      %816 = vmatpush.msra.mxu0 0.0
      %817 = vmatpush.msra.mxu0 0.0
      %818 = vmatpush.msra.mxu0 0.0
      %819 = vmatpush.msra.mxu0 0.0
      %820 = vmatpush.msra.mxu0 0.0
      %821 = vmatpush.msra.mxu0 0.0
      %822 = vmatpush.msra.mxu0 0.0
      %823 = vmatpush.msra.mxu0 0.0
      %824 = vmatpush.msra.mxu0 0.0
      %825 = vmatpush.msra.mxu0 0.0
      %826 = vmatpush.msra.mxu0 0.0
      %827 = vmatpush.msra.mxu0 0.0
      %828 = vmatpush.msra.mxu0 %v773
      %829 = vmatpush.msra.mxu0 %v771
      %830 = vmatmul.f32.gmra.mxu0 %v776
      %v831 = vpop.f32.mrf.mxu0
      %v832 = vadd.f32 0.0, %v831
      %833 = vmatmul.f32.gmra.mxu0 %v779
      %v834 = vpop.f32.mrf.mxu0
      %v835 = vadd.f32 0.0, %v834
      %836 = vmatmul.f32.gmra.mxu0 %v782
      %v837 = vpop.f32.mrf.mxu0
      %v838 = vadd.f32 0.0, %v837
      %839 = vmatmul.f32.gmra.mxu0 %v785
      %v840 = vpop.f32.mrf.mxu0
      %v841 = vadd.f32 0.0, %v840
      %842 = vmatmul.f32.gmra.mxu0 %v788
      %v843 = vpop.f32.mrf.mxu0
      %v844 = vadd.f32 0.0, %v843
      %845 = vmatmul.f32.gmra.mxu0 %v791
      %v846 = vpop.f32.mrf.mxu0
      %v847 = vadd.f32 0.0, %v846
      %848 = vmatmul.f32.gmra.mxu0 %v794
      %v849 = vpop.f32.mrf.mxu0
      %v850 = vadd.f32 0.0, %v849
      %851 = vmatmul.f32.gmra.mxu0 %v797
      %v852 = vpop.f32.mrf.mxu0
      %v853 = vadd.f32 0.0, %v852
      %854 = vmatmul.f32.gmra.mxu0 %v800
      %v855 = vpop.f32.mrf.mxu0
      %v856 = vadd.f32 0.0, %v855
      %857 = vmatmul.f32.gmra.mxu0 %v803
      %v858 = vpop.f32.mrf.mxu0
      %v859 = vadd.f32 0.0, %v858
      %860 = vmatmul.f32.gmra.mxu0 %v806
      %v861 = vpop.f32.mrf.mxu0
      %v862 = vadd.f32 0.0, %v861
      %863 = vmatmul.f32.gmra.mxu0 %v809
      %v864 = vpop.f32.mrf.mxu0
      %v865 = vadd.f32 0.0, %v864
      %866 = vmatmul.f32.gmra.mxu0 %v812
      %v867 = vpop.f32.mrf.mxu0
      %v868 = vadd.f32 0.0, %v867
      %869 = vdwg.mxu0
      %870 = vmatpush.msra.mxu0 0.0
      %871 = vmatpush.msra.mxu0 0.0
      %872 = vmatpush.msra.mxu0 0.0
      %873 = vmatpush.msra.mxu0 0.0
      %874 = vmatpush.msra.mxu0 0.0
      %875 = vmatpush.msra.mxu0 0.0
      %876 = vmatpush.msra.mxu0 0.0
      %877 = vmatpush.msra.mxu0 0.0
      %878 = vmatpush.msra.mxu0 0.0
      %879 = vmatpush.msra.mxu0 0.0
      %880 = vmatpush.msra.mxu0 0.0
      %881 = vmatpush.msra.mxu0 0.0
      %882 = vmatpush.msra.mxu0 0.0
      %883 = vmatpush.msra.mxu0 0.0
      %884 = vmatpush.msra.mxu0 %v774
      %885 = vmatpush.msra.mxu0 %v772
      %886 = vmatmul.f32.gmra.mxu0 %v776
      %v887 = vpop.f32.mrf.mxu0
      %v888 = vadd.f32 0.0, %v887
      %889 = vmatmul.f32.gmra.mxu0 %v779
      %v890 = vpop.f32.mrf.mxu0
      %v891 = vadd.f32 0.0, %v890
      %892 = vmatmul.f32.gmra.mxu0 %v782
      %v893 = vpop.f32.mrf.mxu0
      %v894 = vadd.f32 0.0, %v893
      %895 = vmatmul.f32.gmra.mxu0 %v785
      %v896 = vpop.f32.mrf.mxu0
      %v897 = vadd.f32 0.0, %v896
      %898 = vmatmul.f32.gmra.mxu0 %v788
      %v899 = vpop.f32.mrf.mxu0
      %v900 = vadd.f32 0.0, %v899
      %901 = vmatmul.f32.gmra.mxu0 %v791
      %v902 = vpop.f32.mrf.mxu0
      %v903 = vadd.f32 0.0, %v902
      %904 = vmatmul.f32.gmra.mxu0 %v794
      %v905 = vpop.f32.mrf.mxu0
      %v906 = vadd.f32 0.0, %v905
      %907 = vmatmul.f32.gmra.mxu0 %v797
      %v908 = vpop.f32.mrf.mxu0
      %v909 = vadd.f32 0.0, %v908
      %910 = vmatmul.f32.gmra.mxu0 %v800
      %v911 = vpop.f32.mrf.mxu0
      %v912 = vadd.f32 0.0, %v911
      %913 = vmatmul.f32.gmra.mxu0 %v803
      %v914 = vpop.f32.mrf.mxu0
      %v915 = vadd.f32 0.0, %v914
      %916 = vmatmul.f32.gmra.mxu0 %v806
      %v917 = vpop.f32.mrf.mxu0
      %v918 = vadd.f32 0.0, %v917
      %919 = vmatmul.f32.gmra.mxu0 %v809
      %v920 = vpop.f32.mrf.mxu0
      %v921 = vadd.f32 0.0, %v920
      %922 = vmatmul.f32.gmra.mxu0 %v812
      %v923 = vpop.f32.mrf.mxu0
      %v924 = vadd.f32 0.0, %v923
      %925 = vdwg.mxu0
      %v926 = vld [vmem:[%s212] sm:$0xff]
      %v927 = vld [vmem:[%s212 + $0x8] sm:$0xff]
      %v928 = vld [vmem:[%s212 + $0x10] sm:$0xff]
      %v929 = vld [vmem:[%s212 + $0x18] sm:$0xff]
      %v930 = vld [vmem:[%s212 + $0x20] sm:$0xff]
      %v931 = vld [vmem:[%s212 + $0x28] sm:$0xff]
      %v932 = vld [vmem:[%s212 + $0x30] sm:$0xff]
      %v933 = vld [vmem:[%s212 + $0x38] sm:$0xff]
      %v934 = vld [vmem:[%s212 + $0x40] sm:$0xff]
      %v935 = vld [vmem:[%s212 + $0x48] sm:$0xff]
      %v936 = vld [vmem:[%s212 + $0x50] sm:$0xff]
      %v937 = vld [vmem:[%s212 + $0x58] sm:$0xff]
      %v938 = vld [vmem:[%s212 + $0x60] sm:$0xff]
      %v939 = vld [vmem:[%s212 + $0x68] sm:$0xff]
      %v940 = vld [vmem:[%s212 + $0x70] sm:$0xff]
      %v941 = vld [vmem:[%s212 + $0x78] sm:$0xff]
      %v942 = vld [vmem:[%s212 + $0x80] sm:$0xff]
      %v943 = vld [vmem:[%s212 + $0x88] sm:$0xff]
      %v944 = vld [vmem:[%s212 + $0x90] sm:$0xff]
      %v945 = vld [vmem:[%s212 + $0x98] sm:$0xff]
      %v946 = vld [vmem:[%s212 + $0xa0] sm:$0xff]
      %v947 = vld [vmem:[%s212 + $0xa8] sm:$0xff]
      %v948 = vld [vmem:[%s212 + $0xb0] sm:$0xff]
      %v949 = vld [vmem:[%s212 + $0xb8] sm:$0xff]
      %v950 = vld [vmem:[%s212 + $0xc0] sm:$0x3f]
      %v951 = vld [vmem:[%s212 + $0xc8] sm:$0x3f]
      %v952 = vadd.f32 %v926, %v832
      %v953 = vadd.f32 %v927, %v888
      %v954 = vadd.f32 %v928, %v835
      %v955 = vadd.f32 %v929, %v891
      %v956 = vadd.f32 %v930, %v838
      %v957 = vadd.f32 %v931, %v894
      %v958 = vadd.f32 %v932, %v841
      %v959 = vadd.f32 %v933, %v897
      %v960 = vadd.f32 %v934, %v844
      %v961 = vadd.f32 %v935, %v900
      %v962 = vadd.f32 %v936, %v847
      %v963 = vadd.f32 %v937, %v903
      %v964 = vadd.f32 %v938, %v850
      %v965 = vadd.f32 %v939, %v906
      %v966 = vadd.f32 %v940, %v853
      %v967 = vadd.f32 %v941, %v909
      %v968 = vadd.f32 %v942, %v856
      %v969 = vadd.f32 %v943, %v912
      %v970 = vadd.f32 %v944, %v859
      %v971 = vadd.f32 %v945, %v915
      %v972 = vadd.f32 %v946, %v862
      %v973 = vadd.f32 %v947, %v918
      %v974 = vadd.f32 %v948, %v865
      %v975 = vadd.f32 %v949, %v921
      %v976 = vadd.f32 %v950, %v868
      %v977 = vadd.f32 %v951, %v924
      %978 = vst [vmem:[%s212] sm:$0xff] %v952
      %979 = vst.msk [vmem:[%s212 + $0x8] sm:$0xff] %vm565, %v953
      %980 = vst [vmem:[%s212 + $0x10] sm:$0xff] %v954
      %981 = vst.msk [vmem:[%s212 + $0x18] sm:$0xff] %vm565, %v955
      %982 = vst [vmem:[%s212 + $0x20] sm:$0xff] %v956
      %983 = vst.msk [vmem:[%s212 + $0x28] sm:$0xff] %vm565, %v957
      %984 = vst [vmem:[%s212 + $0x30] sm:$0xff] %v958
      %985 = vst.msk [vmem:[%s212 + $0x38] sm:$0xff] %vm565, %v959
      %986 = vst [vmem:[%s212 + $0x40] sm:$0xff] %v960
      %987 = vst.msk [vmem:[%s212 + $0x48] sm:$0xff] %vm565, %v961
      %988 = vst [vmem:[%s212 + $0x50] sm:$0xff] %v962
      %989 = vst.msk [vmem:[%s212 + $0x58] sm:$0xff] %vm565, %v963
      %990 = vst [vmem:[%s212 + $0x60] sm:$0xff] %v964
      %991 = vst.msk [vmem:[%s212 + $0x68] sm:$0xff] %vm565, %v965
      %992 = vst [vmem:[%s212 + $0x70] sm:$0xff] %v966
      %993 = vst.msk [vmem:[%s212 + $0x78] sm:$0xff] %vm565, %v967
      %994 = vst [vmem:[%s212 + $0x80] sm:$0xff] %v968
      %995 = vst.msk [vmem:[%s212 + $0x88] sm:$0xff] %vm565, %v969
      %996 = vst [vmem:[%s212 + $0x90] sm:$0xff] %v970
      %997 = vst.msk [vmem:[%s212 + $0x98] sm:$0xff] %vm565, %v971
      %998 = vst [vmem:[%s212 + $0xa0] sm:$0xff] %v972
      %999 = vst.msk [vmem:[%s212 + $0xa8] sm:$0xff] %vm565, %v973
      %1000 = vst [vmem:[%s212 + $0xb0] sm:$0xff] %v974
      %1001 = vst.msk [vmem:[%s212 + $0xb8] sm:$0xff] %vm565, %v975
      %1002 = vst [vmem:[%s212 + $0xc0] sm:$0x3f] %v976
      %1003 = vst.msk [vmem:[%s212 + $0xc8] sm:$0x3f] %vm590, %v977
      %s1004 = scalar_lea.vmem %s203, 416
      %v1005 = vld [vmem:[%s1004] sm:$0xff]
      %v1006 = vld [vmem:[%s1004 + $0x8] sm:$0xff]
      %v1007 = vld [vmem:[%s1004 + $0x10] sm:$0xff]
      %v1008 = vld [vmem:[%s1004 + $0x18] sm:$0xff]
      %v1009 = vld [vmem:[%s1004 + $0x20] sm:$0xff]
      %v1010 = vld [vmem:[%s1004 + $0x28] sm:$0xff]
      %v1011 = vld [vmem:[%s1004 + $0x30] sm:$0xff]
      %v1012 = vld [vmem:[%s1004 + $0x38] sm:$0xff]
      %v1013 = vld [vmem:[%s1004 + $0x40] sm:$0xff]
      %v1014 = vld [vmem:[%s1004 + $0x48] sm:$0xff]
      %v1015 = vld [vmem:[%s1004 + $0x50] sm:$0xff]
      %v1016 = vld [vmem:[%s1004 + $0x58] sm:$0xff]
      %v1017 = vld [vmem:[%s1004 + $0x60] sm:$0xff]
      %v1018 = vld [vmem:[%s1004 + $0x68] sm:$0xff]
      %v1019 = vld [vmem:[%s1004 + $0x70] sm:$0xff]
      %v1020 = vld [vmem:[%s1004 + $0x78] sm:$0xff]
      %v1021 = vld [vmem:[%s1004 + $0x80] sm:$0xff]
      %v1022 = vld [vmem:[%s1004 + $0x88] sm:$0xff]
      %v1023 = vld [vmem:[%s1004 + $0x90] sm:$0xff]
      %v1024 = vld [vmem:[%s1004 + $0x98] sm:$0xff]
      %v1025 = vld [vmem:[%s1004 + $0xa0] sm:$0xff]
      %v1026 = vld [vmem:[%s1004 + $0xa8] sm:$0xff]
      %v1027 = vld [vmem:[%s1004 + $0xb0] sm:$0xff]
      %v1028 = vld [vmem:[%s1004 + $0xb8] sm:$0xff]
      %v1029 = vld [vmem:[%s1004 + $0xc0] sm:$0x3f]
      %v1030 = vld [vmem:[%s1004 + $0xc8] sm:$0x3f]
      %v1032 = vsel %vm257, %v1006, 0
      %v1035 = vsel %vm257, %v1008, 0
      %v1038 = vsel %vm257, %v1010, 0
      %v1041 = vsel %vm257, %v1012, 0
      %v1044 = vsel %vm257, %v1014, 0
      %v1047 = vsel %vm257, %v1016, 0
      %v1050 = vsel %vm257, %v1018, 0
      %v1053 = vsel %vm257, %v1020, 0
      %v1056 = vsel %vm257, %v1022, 0
      %v1059 = vsel %vm257, %v1024, 0
      %v1062 = vsel %vm257, %v1026, 0
      %v1065 = vsel %vm257, %v1028, 0
      %v1068 = vsel %vm257, %v1030, 0
      %1070 = vmatpush.msra.mxu0 %v228
      %1071 = vmatpush.msra.mxu0 %v227
      %1072 = vmatpush.msra.mxu0 %v226
      %1073 = vmatpush.msra.mxu0 %v225
      %1074 = vmatpush.msra.mxu0 %v224
      %1075 = vmatpush.msra.mxu0 %v223
      %1076 = vmatpush.msra.mxu0 %v222
      %1077 = vmatpush.msra.mxu0 %v221
      %1078 = vmatpush.msra.mxu0 %v220
      %1079 = vmatpush.msra.mxu0 %v219
      %1080 = vmatpush.msra.mxu0 %v218
      %1081 = vmatpush.msra.mxu0 %v217
      %1082 = vmatpush.msra.mxu0 %v216
      %1083 = vmatpush.msra.mxu0 %v215
      %1084 = vmatpush.msra.mxu0 %v214
      %1085 = vmatpush.msra.mxu0 %v213
      %1086 = vmatmul.f32.gmra.mxu0 %v1005
      %v1087 = vpop.f32.mrf.mxu0
      %v1088 = vadd.f32 0.0, %v1087
      %1089 = vmatmul.f32.gmra.mxu0 %v1007
      %v1090 = vpop.f32.mrf.mxu0
      %v1091 = vadd.f32 0.0, %v1090
      %1092 = vmatmul.f32.gmra.mxu0 %v1009
      %v1093 = vpop.f32.mrf.mxu0
      %v1094 = vadd.f32 0.0, %v1093
      %1095 = vmatmul.f32.gmra.mxu0 %v1011
      %v1096 = vpop.f32.mrf.mxu0
      %v1097 = vadd.f32 0.0, %v1096
      %1098 = vmatmul.f32.gmra.mxu0 %v1013
      %v1099 = vpop.f32.mrf.mxu0
      %v1100 = vadd.f32 0.0, %v1099
      %1101 = vmatmul.f32.gmra.mxu0 %v1015
      %v1102 = vpop.f32.mrf.mxu0
      %v1103 = vadd.f32 0.0, %v1102
      %1104 = vmatmul.f32.gmra.mxu0 %v1017
      %v1105 = vpop.f32.mrf.mxu0
      %v1106 = vadd.f32 0.0, %v1105
      %1107 = vmatmul.f32.gmra.mxu0 %v1019
      %v1108 = vpop.f32.mrf.mxu0
      %v1109 = vadd.f32 0.0, %v1108
      %1110 = vmatmul.f32.gmra.mxu0 %v1021
      %v1111 = vpop.f32.mrf.mxu0
      %v1112 = vadd.f32 0.0, %v1111
      %1113 = vmatmul.f32.gmra.mxu0 %v1023
      %v1114 = vpop.f32.mrf.mxu0
      %v1115 = vadd.f32 0.0, %v1114
      %1116 = vmatmul.f32.gmra.mxu0 %v1025
      %v1117 = vpop.f32.mrf.mxu0
      %v1118 = vadd.f32 0.0, %v1117
      %1119 = vmatmul.f32.gmra.mxu0 %v1027
      %v1120 = vpop.f32.mrf.mxu0
      %v1121 = vadd.f32 0.0, %v1120
      %1122 = vmatmul.f32.gmra.mxu0 %v1029
      %v1123 = vpop.f32.mrf.mxu0
      %v1124 = vadd.f32 0.0, %v1123
      %1125 = vdwg.mxu0
      %1126 = vmatpush.msra.mxu0 0.0
      %1127 = vmatpush.msra.mxu0 0.0
      %1128 = vmatpush.msra.mxu0 0.0
      %1129 = vmatpush.msra.mxu0 0.0
      %1130 = vmatpush.msra.mxu0 0.0
      %1131 = vmatpush.msra.mxu0 0.0
      %1132 = vmatpush.msra.mxu0 0.0
      %1133 = vmatpush.msra.mxu0 0.0
      %1134 = vmatpush.msra.mxu0 0.0
      %1135 = vmatpush.msra.mxu0 0.0
      %1136 = vmatpush.msra.mxu0 0.0
      %1137 = vmatpush.msra.mxu0 0.0
      %1138 = vmatpush.msra.mxu0 0.0
      %1139 = vmatpush.msra.mxu0 0.0
      %1140 = vmatpush.msra.mxu0 %v230
      %1141 = vmatpush.msra.mxu0 %v229
      %1142 = vmatmul.f32.gmra.mxu0 %v1032
      %v1143 = vpop.f32.mrf.mxu0
      %v1144 = vadd.f32 %v1088, %v1143
      %1145 = vmatmul.f32.gmra.mxu0 %v1035
      %v1146 = vpop.f32.mrf.mxu0
      %v1147 = vadd.f32 %v1091, %v1146
      %1148 = vmatmul.f32.gmra.mxu0 %v1038
      %v1149 = vpop.f32.mrf.mxu0
      %v1150 = vadd.f32 %v1094, %v1149
      %1151 = vmatmul.f32.gmra.mxu0 %v1041
      %v1152 = vpop.f32.mrf.mxu0
      %v1153 = vadd.f32 %v1097, %v1152
      %1154 = vmatmul.f32.gmra.mxu0 %v1044
      %v1155 = vpop.f32.mrf.mxu0
      %v1156 = vadd.f32 %v1100, %v1155
      %1157 = vmatmul.f32.gmra.mxu0 %v1047
      %v1158 = vpop.f32.mrf.mxu0
      %v1159 = vadd.f32 %v1103, %v1158
      %1160 = vmatmul.f32.gmra.mxu0 %v1050
      %v1161 = vpop.f32.mrf.mxu0
      %v1162 = vadd.f32 %v1106, %v1161
      %1163 = vmatmul.f32.gmra.mxu0 %v1053
      %v1164 = vpop.f32.mrf.mxu0
      %v1165 = vadd.f32 %v1109, %v1164
      %1166 = vmatmul.f32.gmra.mxu0 %v1056
      %v1167 = vpop.f32.mrf.mxu0
      %v1168 = vadd.f32 %v1112, %v1167
      %1169 = vmatmul.f32.gmra.mxu0 %v1059
      %v1170 = vpop.f32.mrf.mxu0
      %v1171 = vadd.f32 %v1115, %v1170
      %1172 = vmatmul.f32.gmra.mxu0 %v1062
      %v1173 = vpop.f32.mrf.mxu0
      %v1174 = vadd.f32 %v1118, %v1173
      %1175 = vmatmul.f32.gmra.mxu0 %v1065
      %v1176 = vpop.f32.mrf.mxu0
      %v1177 = vadd.f32 %v1121, %v1176
      %1178 = vmatmul.f32.gmra.mxu0 %v1068
      %v1179 = vpop.f32.mrf.mxu0
      %v1180 = vadd.f32 %v1124, %v1179
      %1181 = vdwg.mxu0
      %s1182 = scalar_lea.vmem %s2, 64
      %v1183 = vld [vmem:[%s1182] sm:$0xff]
      %v1184 = vld [vmem:[%s1182 + $0x8] sm:$0xff]
      %v1185 = vld [vmem:[%s1182 + $0x10] sm:$0xff]
      %v1186 = vld [vmem:[%s1182 + $0x18] sm:$0xff]
      %v1188 = vsel %vm257, %v1144, 0
      %v1191 = vsel %vm257, %v1147, 0
      %v1194 = vsel %vm257, %v1150, 0
      %v1197 = vsel %vm257, %v1153, 0
      %v1200 = vsel %vm257, %v1156, 0
      %v1203 = vsel %vm257, %v1159, 0
      %v1206 = vsel %vm257, %v1162, 0
      %v1209 = vsel %vm257, %v1165, 0
      %v1212 = vsel %vm257, %v1168, 0
      %v1215 = vsel %vm257, %v1171, 0
      %v1218 = vsel %vm257, %v1174, 0
      %v1221 = vsel %vm257, %v1177, 0
      %v1224 = vsel %vm257, %v1180, 0
      %1226 = vmatpush.msra.mxu0 0.0
      %1227 = vmatpush.msra.mxu0 0.0
      %1228 = vmatpush.msra.mxu0 0.0
      %1229 = vmatpush.msra.mxu0 0.0
      %1230 = vmatpush.msra.mxu0 0.0
      %1231 = vmatpush.msra.mxu0 0.0
      %1232 = vmatpush.msra.mxu0 0.0
      %1233 = vmatpush.msra.mxu0 0.0
      %1234 = vmatpush.msra.mxu0 0.0
      %1235 = vmatpush.msra.mxu0 0.0
      %1236 = vmatpush.msra.mxu0 0.0
      %1237 = vmatpush.msra.mxu0 0.0
      %1238 = vmatpush.msra.mxu0 0.0
      %1239 = vmatpush.msra.mxu0 0.0
      %1240 = vmatpush.msra.mxu0 %v1185
      %1241 = vmatpush.msra.mxu0 %v1183
      %1242 = vmatmul.f32.gmra.mxu0 %v1188
      %v1243 = vpop.f32.mrf.mxu0
      %v1244 = vadd.f32 0.0, %v1243
      %1245 = vmatmul.f32.gmra.mxu0 %v1191
      %v1246 = vpop.f32.mrf.mxu0
      %v1247 = vadd.f32 0.0, %v1246
      %1248 = vmatmul.f32.gmra.mxu0 %v1194
      %v1249 = vpop.f32.mrf.mxu0
      %v1250 = vadd.f32 0.0, %v1249
      %1251 = vmatmul.f32.gmra.mxu0 %v1197
      %v1252 = vpop.f32.mrf.mxu0
      %v1253 = vadd.f32 0.0, %v1252
      %1254 = vmatmul.f32.gmra.mxu0 %v1200
      %v1255 = vpop.f32.mrf.mxu0
      %v1256 = vadd.f32 0.0, %v1255
      %1257 = vmatmul.f32.gmra.mxu0 %v1203
      %v1258 = vpop.f32.mrf.mxu0
      %v1259 = vadd.f32 0.0, %v1258
      %1260 = vmatmul.f32.gmra.mxu0 %v1206
      %v1261 = vpop.f32.mrf.mxu0
      %v1262 = vadd.f32 0.0, %v1261
      %1263 = vmatmul.f32.gmra.mxu0 %v1209
      %v1264 = vpop.f32.mrf.mxu0
      %v1265 = vadd.f32 0.0, %v1264
      %1266 = vmatmul.f32.gmra.mxu0 %v1212
      %v1267 = vpop.f32.mrf.mxu0
      %v1268 = vadd.f32 0.0, %v1267
      %1269 = vmatmul.f32.gmra.mxu0 %v1215
      %v1270 = vpop.f32.mrf.mxu0
      %v1271 = vadd.f32 0.0, %v1270
      %1272 = vmatmul.f32.gmra.mxu0 %v1218
      %v1273 = vpop.f32.mrf.mxu0
      %v1274 = vadd.f32 0.0, %v1273
      %1275 = vmatmul.f32.gmra.mxu0 %v1221
      %v1276 = vpop.f32.mrf.mxu0
      %v1277 = vadd.f32 0.0, %v1276
      %1278 = vmatmul.f32.gmra.mxu0 %v1224
      %v1279 = vpop.f32.mrf.mxu0
      %v1280 = vadd.f32 0.0, %v1279
      %1281 = vdwg.mxu0
      %1282 = vmatpush.msra.mxu0 0.0
      %1283 = vmatpush.msra.mxu0 0.0
      %1284 = vmatpush.msra.mxu0 0.0
      %1285 = vmatpush.msra.mxu0 0.0
      %1286 = vmatpush.msra.mxu0 0.0
      %1287 = vmatpush.msra.mxu0 0.0
      %1288 = vmatpush.msra.mxu0 0.0
      %1289 = vmatpush.msra.mxu0 0.0
      %1290 = vmatpush.msra.mxu0 0.0
      %1291 = vmatpush.msra.mxu0 0.0
      %1292 = vmatpush.msra.mxu0 0.0
      %1293 = vmatpush.msra.mxu0 0.0
      %1294 = vmatpush.msra.mxu0 0.0
      %1295 = vmatpush.msra.mxu0 0.0
      %1296 = vmatpush.msra.mxu0 %v1186
      %1297 = vmatpush.msra.mxu0 %v1184
      %1298 = vmatmul.f32.gmra.mxu0 %v1188
      %v1299 = vpop.f32.mrf.mxu0
      %v1300 = vadd.f32 0.0, %v1299
      %1301 = vmatmul.f32.gmra.mxu0 %v1191
      %v1302 = vpop.f32.mrf.mxu0
      %v1303 = vadd.f32 0.0, %v1302
      %1304 = vmatmul.f32.gmra.mxu0 %v1194
      %v1305 = vpop.f32.mrf.mxu0
      %v1306 = vadd.f32 0.0, %v1305
      %1307 = vmatmul.f32.gmra.mxu0 %v1197
      %v1308 = vpop.f32.mrf.mxu0
      %v1309 = vadd.f32 0.0, %v1308
      %1310 = vmatmul.f32.gmra.mxu0 %v1200
      %v1311 = vpop.f32.mrf.mxu0
      %v1312 = vadd.f32 0.0, %v1311
      %1313 = vmatmul.f32.gmra.mxu0 %v1203
      %v1314 = vpop.f32.mrf.mxu0
      %v1315 = vadd.f32 0.0, %v1314
      %1316 = vmatmul.f32.gmra.mxu0 %v1206
      %v1317 = vpop.f32.mrf.mxu0
      %v1318 = vadd.f32 0.0, %v1317
      %1319 = vmatmul.f32.gmra.mxu0 %v1209
      %v1320 = vpop.f32.mrf.mxu0
      %v1321 = vadd.f32 0.0, %v1320
      %1322 = vmatmul.f32.gmra.mxu0 %v1212
      %v1323 = vpop.f32.mrf.mxu0
      %v1324 = vadd.f32 0.0, %v1323
      %1325 = vmatmul.f32.gmra.mxu0 %v1215
      %v1326 = vpop.f32.mrf.mxu0
      %v1327 = vadd.f32 0.0, %v1326
      %1328 = vmatmul.f32.gmra.mxu0 %v1218
      %v1329 = vpop.f32.mrf.mxu0
      %v1330 = vadd.f32 0.0, %v1329
      %1331 = vmatmul.f32.gmra.mxu0 %v1221
      %v1332 = vpop.f32.mrf.mxu0
      %v1333 = vadd.f32 0.0, %v1332
      %1334 = vmatmul.f32.gmra.mxu0 %v1224
      %v1335 = vpop.f32.mrf.mxu0
      %v1336 = vadd.f32 0.0, %v1335
      %1337 = vdwg.mxu0
      %v1338 = vld [vmem:[%s212] sm:$0xff]
      %v1339 = vld [vmem:[%s212 + $0x8] sm:$0xff]
      %v1340 = vld [vmem:[%s212 + $0x10] sm:$0xff]
      %v1341 = vld [vmem:[%s212 + $0x18] sm:$0xff]
      %v1342 = vld [vmem:[%s212 + $0x20] sm:$0xff]
      %v1343 = vld [vmem:[%s212 + $0x28] sm:$0xff]
      %v1344 = vld [vmem:[%s212 + $0x30] sm:$0xff]
      %v1345 = vld [vmem:[%s212 + $0x38] sm:$0xff]
      %v1346 = vld [vmem:[%s212 + $0x40] sm:$0xff]
      %v1347 = vld [vmem:[%s212 + $0x48] sm:$0xff]
      %v1348 = vld [vmem:[%s212 + $0x50] sm:$0xff]
      %v1349 = vld [vmem:[%s212 + $0x58] sm:$0xff]
      %v1350 = vld [vmem:[%s212 + $0x60] sm:$0xff]
      %v1351 = vld [vmem:[%s212 + $0x68] sm:$0xff]
      %v1352 = vld [vmem:[%s212 + $0x70] sm:$0xff]
      %v1353 = vld [vmem:[%s212 + $0x78] sm:$0xff]
      %v1354 = vld [vmem:[%s212 + $0x80] sm:$0xff]
      %v1355 = vld [vmem:[%s212 + $0x88] sm:$0xff]
      %v1356 = vld [vmem:[%s212 + $0x90] sm:$0xff]
      %v1357 = vld [vmem:[%s212 + $0x98] sm:$0xff]
      %v1358 = vld [vmem:[%s212 + $0xa0] sm:$0xff]
      %v1359 = vld [vmem:[%s212 + $0xa8] sm:$0xff]
      %v1360 = vld [vmem:[%s212 + $0xb0] sm:$0xff]
      %v1361 = vld [vmem:[%s212 + $0xb8] sm:$0xff]
      %v1362 = vld [vmem:[%s212 + $0xc0] sm:$0x3f]
      %v1363 = vld [vmem:[%s212 + $0xc8] sm:$0x3f]
      %v1364 = vadd.f32 %v1338, %v1244
      %v1365 = vadd.f32 %v1339, %v1300
      %v1366 = vadd.f32 %v1340, %v1247
      %v1367 = vadd.f32 %v1341, %v1303
      %v1368 = vadd.f32 %v1342, %v1250
      %v1369 = vadd.f32 %v1343, %v1306
      %v1370 = vadd.f32 %v1344, %v1253
      %v1371 = vadd.f32 %v1345, %v1309
      %v1372 = vadd.f32 %v1346, %v1256
      %v1373 = vadd.f32 %v1347, %v1312
      %v1374 = vadd.f32 %v1348, %v1259
      %v1375 = vadd.f32 %v1349, %v1315
      %v1376 = vadd.f32 %v1350, %v1262
      %v1377 = vadd.f32 %v1351, %v1318
      %v1378 = vadd.f32 %v1352, %v1265
      %v1379 = vadd.f32 %v1353, %v1321
      %v1380 = vadd.f32 %v1354, %v1268
      %v1381 = vadd.f32 %v1355, %v1324
      %v1382 = vadd.f32 %v1356, %v1271
      %v1383 = vadd.f32 %v1357, %v1327
      %v1384 = vadd.f32 %v1358, %v1274
      %v1385 = vadd.f32 %v1359, %v1330
      %v1386 = vadd.f32 %v1360, %v1277
      %v1387 = vadd.f32 %v1361, %v1333
      %v1388 = vadd.f32 %v1362, %v1280
      %v1389 = vadd.f32 %v1363, %v1336
      %1390 = vst [vmem:[%s212] sm:$0xff] %v1364
      %1391 = vst.msk [vmem:[%s212 + $0x8] sm:$0xff] %vm565, %v1365
      %1392 = vst [vmem:[%s212 + $0x10] sm:$0xff] %v1366
      %1393 = vst.msk [vmem:[%s212 + $0x18] sm:$0xff] %vm565, %v1367
      %1394 = vst [vmem:[%s212 + $0x20] sm:$0xff] %v1368
      %1395 = vst.msk [vmem:[%s212 + $0x28] sm:$0xff] %vm565, %v1369
      %1396 = vst [vmem:[%s212 + $0x30] sm:$0xff] %v1370
      %1397 = vst.msk [vmem:[%s212 + $0x38] sm:$0xff] %vm565, %v1371
      %1398 = vst [vmem:[%s212 + $0x40] sm:$0xff] %v1372
      %1399 = vst.msk [vmem:[%s212 + $0x48] sm:$0xff] %vm565, %v1373
      %1400 = vst [vmem:[%s212 + $0x50] sm:$0xff] %v1374
      %1401 = vst.msk [vmem:[%s212 + $0x58] sm:$0xff] %vm565, %v1375
      %1402 = vst [vmem:[%s212 + $0x60] sm:$0xff] %v1376
      %1403 = vst.msk [vmem:[%s212 + $0x68] sm:$0xff] %vm565, %v1377
      %1404 = vst [vmem:[%s212 + $0x70] sm:$0xff] %v1378
      %1405 = vst.msk [vmem:[%s212 + $0x78] sm:$0xff] %vm565, %v1379
      %1406 = vst [vmem:[%s212 + $0x80] sm:$0xff] %v1380
      %1407 = vst.msk [vmem:[%s212 + $0x88] sm:$0xff] %vm565, %v1381
      %1408 = vst [vmem:[%s212 + $0x90] sm:$0xff] %v1382
      %1409 = vst.msk [vmem:[%s212 + $0x98] sm:$0xff] %vm565, %v1383
      %1410 = vst [vmem:[%s212 + $0xa0] sm:$0xff] %v1384
      %1411 = vst.msk [vmem:[%s212 + $0xa8] sm:$0xff] %vm565, %v1385
      %1412 = vst [vmem:[%s212 + $0xb0] sm:$0xff] %v1386
      %1413 = vst.msk [vmem:[%s212 + $0xb8] sm:$0xff] %vm565, %v1387
      %1414 = vst [vmem:[%s212 + $0xc0] sm:$0x3f] %v1388
      %1415 = vst.msk [vmem:[%s212 + $0xc8] sm:$0x3f] %vm590, %v1389
      %s1416 = scalar_lea.vmem %s203, 624
      %v1417 = vld [vmem:[%s1416] sm:$0xff]
      %v1418 = vld [vmem:[%s1416 + $0x8] sm:$0xff]
      %v1419 = vld [vmem:[%s1416 + $0x10] sm:$0xff]
      %v1420 = vld [vmem:[%s1416 + $0x18] sm:$0xff]
      %v1421 = vld [vmem:[%s1416 + $0x20] sm:$0xff]
      %v1422 = vld [vmem:[%s1416 + $0x28] sm:$0xff]
      %v1423 = vld [vmem:[%s1416 + $0x30] sm:$0xff]
      %v1424 = vld [vmem:[%s1416 + $0x38] sm:$0xff]
      %v1425 = vld [vmem:[%s1416 + $0x40] sm:$0xff]
      %v1426 = vld [vmem:[%s1416 + $0x48] sm:$0xff]
      %v1427 = vld [vmem:[%s1416 + $0x50] sm:$0xff]
      %v1428 = vld [vmem:[%s1416 + $0x58] sm:$0xff]
      %v1429 = vld [vmem:[%s1416 + $0x60] sm:$0xff]
      %v1430 = vld [vmem:[%s1416 + $0x68] sm:$0xff]
      %v1431 = vld [vmem:[%s1416 + $0x70] sm:$0xff]
      %v1432 = vld [vmem:[%s1416 + $0x78] sm:$0xff]
      %v1433 = vld [vmem:[%s1416 + $0x80] sm:$0xff]
      %v1434 = vld [vmem:[%s1416 + $0x88] sm:$0xff]
      %v1435 = vld [vmem:[%s1416 + $0x90] sm:$0xff]
      %v1436 = vld [vmem:[%s1416 + $0x98] sm:$0xff]
      %v1437 = vld [vmem:[%s1416 + $0xa0] sm:$0xff]
      %v1438 = vld [vmem:[%s1416 + $0xa8] sm:$0xff]
      %v1439 = vld [vmem:[%s1416 + $0xb0] sm:$0xff]
      %v1440 = vld [vmem:[%s1416 + $0xb8] sm:$0xff]
      %v1441 = vld [vmem:[%s1416 + $0xc0] sm:$0x3f]
      %v1442 = vld [vmem:[%s1416 + $0xc8] sm:$0x3f]
      %v1444 = vsel %vm257, %v1418, 0
      %v1447 = vsel %vm257, %v1420, 0
      %v1450 = vsel %vm257, %v1422, 0
      %v1453 = vsel %vm257, %v1424, 0
      %v1456 = vsel %vm257, %v1426, 0
      %v1459 = vsel %vm257, %v1428, 0
      %v1462 = vsel %vm257, %v1430, 0
      %v1465 = vsel %vm257, %v1432, 0
      %v1468 = vsel %vm257, %v1434, 0
      %v1471 = vsel %vm257, %v1436, 0
      %v1474 = vsel %vm257, %v1438, 0
      %v1477 = vsel %vm257, %v1440, 0
      %v1480 = vsel %vm257, %v1442, 0
      %1482 = vmatpush.msra.mxu0 %v228
      %1483 = vmatpush.msra.mxu0 %v227
      %1484 = vmatpush.msra.mxu0 %v226
      %1485 = vmatpush.msra.mxu0 %v225
      %1486 = vmatpush.msra.mxu0 %v224
      %1487 = vmatpush.msra.mxu0 %v223
      %1488 = vmatpush.msra.mxu0 %v222
      %1489 = vmatpush.msra.mxu0 %v221
      %1490 = vmatpush.msra.mxu0 %v220
      %1491 = vmatpush.msra.mxu0 %v219
      %1492 = vmatpush.msra.mxu0 %v218
      %1493 = vmatpush.msra.mxu0 %v217
      %1494 = vmatpush.msra.mxu0 %v216
      %1495 = vmatpush.msra.mxu0 %v215
      %1496 = vmatpush.msra.mxu0 %v214
      %1497 = vmatpush.msra.mxu0 %v213
      %1498 = vmatmul.f32.gmra.mxu0 %v1417
      %v1499 = vpop.f32.mrf.mxu0
      %v1500 = vadd.f32 0.0, %v1499
      %1501 = vmatmul.f32.gmra.mxu0 %v1419
      %v1502 = vpop.f32.mrf.mxu0
      %v1503 = vadd.f32 0.0, %v1502
      %1504 = vmatmul.f32.gmra.mxu0 %v1421
      %v1505 = vpop.f32.mrf.mxu0
      %v1506 = vadd.f32 0.0, %v1505
      %1507 = vmatmul.f32.gmra.mxu0 %v1423
      %v1508 = vpop.f32.mrf.mxu0
      %v1509 = vadd.f32 0.0, %v1508
      %1510 = vmatmul.f32.gmra.mxu0 %v1425
      %v1511 = vpop.f32.mrf.mxu0
      %v1512 = vadd.f32 0.0, %v1511
      %1513 = vmatmul.f32.gmra.mxu0 %v1427
      %v1514 = vpop.f32.mrf.mxu0
      %v1515 = vadd.f32 0.0, %v1514
      %1516 = vmatmul.f32.gmra.mxu0 %v1429
      %v1517 = vpop.f32.mrf.mxu0
      %v1518 = vadd.f32 0.0, %v1517
      %1519 = vmatmul.f32.gmra.mxu0 %v1431
      %v1520 = vpop.f32.mrf.mxu0
      %v1521 = vadd.f32 0.0, %v1520
      %1522 = vmatmul.f32.gmra.mxu0 %v1433
      %v1523 = vpop.f32.mrf.mxu0
      %v1524 = vadd.f32 0.0, %v1523
      %1525 = vmatmul.f32.gmra.mxu0 %v1435
      %v1526 = vpop.f32.mrf.mxu0
      %v1527 = vadd.f32 0.0, %v1526
      %1528 = vmatmul.f32.gmra.mxu0 %v1437
      %v1529 = vpop.f32.mrf.mxu0
      %v1530 = vadd.f32 0.0, %v1529
      %1531 = vmatmul.f32.gmra.mxu0 %v1439
      %v1532 = vpop.f32.mrf.mxu0
      %v1533 = vadd.f32 0.0, %v1532
      %1534 = vmatmul.f32.gmra.mxu0 %v1441
      %v1535 = vpop.f32.mrf.mxu0
      %v1536 = vadd.f32 0.0, %v1535
      %1537 = vdwg.mxu0
      %1538 = vmatpush.msra.mxu0 0.0
      %1539 = vmatpush.msra.mxu0 0.0
      %1540 = vmatpush.msra.mxu0 0.0
      %1541 = vmatpush.msra.mxu0 0.0
      %1542 = vmatpush.msra.mxu0 0.0
      %1543 = vmatpush.msra.mxu0 0.0
      %1544 = vmatpush.msra.mxu0 0.0
      %1545 = vmatpush.msra.mxu0 0.0
      %1546 = vmatpush.msra.mxu0 0.0
      %1547 = vmatpush.msra.mxu0 0.0
      %1548 = vmatpush.msra.mxu0 0.0
      %1549 = vmatpush.msra.mxu0 0.0
      %1550 = vmatpush.msra.mxu0 0.0
      %1551 = vmatpush.msra.mxu0 0.0
      %1552 = vmatpush.msra.mxu0 %v230
      %1553 = vmatpush.msra.mxu0 %v229
      %1554 = vmatmul.f32.gmra.mxu0 %v1444
      %v1555 = vpop.f32.mrf.mxu0
      %v1556 = vadd.f32 %v1500, %v1555
      %1557 = vmatmul.f32.gmra.mxu0 %v1447
      %v1558 = vpop.f32.mrf.mxu0
      %v1559 = vadd.f32 %v1503, %v1558
      %1560 = vmatmul.f32.gmra.mxu0 %v1450
      %v1561 = vpop.f32.mrf.mxu0
      %v1562 = vadd.f32 %v1506, %v1561
      %1563 = vmatmul.f32.gmra.mxu0 %v1453
      %v1564 = vpop.f32.mrf.mxu0
      %v1565 = vadd.f32 %v1509, %v1564
      %1566 = vmatmul.f32.gmra.mxu0 %v1456
      %v1567 = vpop.f32.mrf.mxu0
      %v1568 = vadd.f32 %v1512, %v1567
      %1569 = vmatmul.f32.gmra.mxu0 %v1459
      %v1570 = vpop.f32.mrf.mxu0
      %v1571 = vadd.f32 %v1515, %v1570
      %1572 = vmatmul.f32.gmra.mxu0 %v1462
      %v1573 = vpop.f32.mrf.mxu0
      %v1574 = vadd.f32 %v1518, %v1573
      %1575 = vmatmul.f32.gmra.mxu0 %v1465
      %v1576 = vpop.f32.mrf.mxu0
      %v1577 = vadd.f32 %v1521, %v1576
      %1578 = vmatmul.f32.gmra.mxu0 %v1468
      %v1579 = vpop.f32.mrf.mxu0
      %v1580 = vadd.f32 %v1524, %v1579
      %1581 = vmatmul.f32.gmra.mxu0 %v1471
      %v1582 = vpop.f32.mrf.mxu0
      %v1583 = vadd.f32 %v1527, %v1582
      %1584 = vmatmul.f32.gmra.mxu0 %v1474
      %v1585 = vpop.f32.mrf.mxu0
      %v1586 = vadd.f32 %v1530, %v1585
      %1587 = vmatmul.f32.gmra.mxu0 %v1477
      %v1588 = vpop.f32.mrf.mxu0
      %v1589 = vadd.f32 %v1533, %v1588
      %1590 = vmatmul.f32.gmra.mxu0 %v1480
      %v1591 = vpop.f32.mrf.mxu0
      %v1592 = vadd.f32 %v1536, %v1591
      %1593 = vdwg.mxu0
      %s1594 = scalar_lea.vmem %s2, 96
      %v1595 = vld [vmem:[%s1594] sm:$0xff]
      %v1596 = vld [vmem:[%s1594 + $0x8] sm:$0xff]
      %v1597 = vld [vmem:[%s1594 + $0x10] sm:$0xff]
      %v1598 = vld [vmem:[%s1594 + $0x18] sm:$0xff]
      %v1600 = vsel %vm257, %v1556, 0
      %v1603 = vsel %vm257, %v1559, 0
      %v1606 = vsel %vm257, %v1562, 0
      %v1609 = vsel %vm257, %v1565, 0
      %v1612 = vsel %vm257, %v1568, 0
      %v1615 = vsel %vm257, %v1571, 0
      %v1618 = vsel %vm257, %v1574, 0
      %v1621 = vsel %vm257, %v1577, 0
      %v1624 = vsel %vm257, %v1580, 0
      %v1627 = vsel %vm257, %v1583, 0
      %v1630 = vsel %vm257, %v1586, 0
      %v1633 = vsel %vm257, %v1589, 0
      %v1636 = vsel %vm257, %v1592, 0
      %1638 = vmatpush.msra.mxu0 0.0
      %1639 = vmatpush.msra.mxu0 0.0
      %1640 = vmatpush.msra.mxu0 0.0
      %1641 = vmatpush.msra.mxu0 0.0
      %1642 = vmatpush.msra.mxu0 0.0
      %1643 = vmatpush.msra.mxu0 0.0
      %1644 = vmatpush.msra.mxu0 0.0
      %1645 = vmatpush.msra.mxu0 0.0
      %1646 = vmatpush.msra.mxu0 0.0
      %1647 = vmatpush.msra.mxu0 0.0
      %1648 = vmatpush.msra.mxu0 0.0
      %1649 = vmatpush.msra.mxu0 0.0
      %1650 = vmatpush.msra.mxu0 0.0
      %1651 = vmatpush.msra.mxu0 0.0
      %1652 = vmatpush.msra.mxu0 %v1597
      %1653 = vmatpush.msra.mxu0 %v1595
      %1654 = vmatmul.f32.gmra.mxu0 %v1600
      %v1655 = vpop.f32.mrf.mxu0
      %v1656 = vadd.f32 0.0, %v1655
      %1657 = vmatmul.f32.gmra.mxu0 %v1603
      %v1658 = vpop.f32.mrf.mxu0
      %v1659 = vadd.f32 0.0, %v1658
      %1660 = vmatmul.f32.gmra.mxu0 %v1606
      %v1661 = vpop.f32.mrf.mxu0
      %v1662 = vadd.f32 0.0, %v1661
      %1663 = vmatmul.f32.gmra.mxu0 %v1609
      %v1664 = vpop.f32.mrf.mxu0
      %v1665 = vadd.f32 0.0, %v1664
      %1666 = vmatmul.f32.gmra.mxu0 %v1612
      %v1667 = vpop.f32.mrf.mxu0
      %v1668 = vadd.f32 0.0, %v1667
      %1669 = vmatmul.f32.gmra.mxu0 %v1615
      %v1670 = vpop.f32.mrf.mxu0
      %v1671 = vadd.f32 0.0, %v1670
      %1672 = vmatmul.f32.gmra.mxu0 %v1618
      %v1673 = vpop.f32.mrf.mxu0
      %v1674 = vadd.f32 0.0, %v1673
      %1675 = vmatmul.f32.gmra.mxu0 %v1621
      %v1676 = vpop.f32.mrf.mxu0
      %v1677 = vadd.f32 0.0, %v1676
      %1678 = vmatmul.f32.gmra.mxu0 %v1624
      %v1679 = vpop.f32.mrf.mxu0
      %v1680 = vadd.f32 0.0, %v1679
      %1681 = vmatmul.f32.gmra.mxu0 %v1627
      %v1682 = vpop.f32.mrf.mxu0
      %v1683 = vadd.f32 0.0, %v1682
      %1684 = vmatmul.f32.gmra.mxu0 %v1630
      %v1685 = vpop.f32.mrf.mxu0
      %v1686 = vadd.f32 0.0, %v1685
      %1687 = vmatmul.f32.gmra.mxu0 %v1633
      %v1688 = vpop.f32.mrf.mxu0
      %v1689 = vadd.f32 0.0, %v1688
      %1690 = vmatmul.f32.gmra.mxu0 %v1636
      %v1691 = vpop.f32.mrf.mxu0
      %v1692 = vadd.f32 0.0, %v1691
      %1693 = vdwg.mxu0
      %1694 = vmatpush.msra.mxu0 0.0
      %1695 = vmatpush.msra.mxu0 0.0
      %1696 = vmatpush.msra.mxu0 0.0
      %1697 = vmatpush.msra.mxu0 0.0
      %1698 = vmatpush.msra.mxu0 0.0
      %1699 = vmatpush.msra.mxu0 0.0
      %1700 = vmatpush.msra.mxu0 0.0
      %1701 = vmatpush.msra.mxu0 0.0
      %1702 = vmatpush.msra.mxu0 0.0
      %1703 = vmatpush.msra.mxu0 0.0
      %1704 = vmatpush.msra.mxu0 0.0
      %1705 = vmatpush.msra.mxu0 0.0
      %1706 = vmatpush.msra.mxu0 0.0
      %1707 = vmatpush.msra.mxu0 0.0
      %1708 = vmatpush.msra.mxu0 %v1598
      %1709 = vmatpush.msra.mxu0 %v1596
      %1710 = vmatmul.f32.gmra.mxu0 %v1600
      %v1711 = vpop.f32.mrf.mxu0
      %v1712 = vadd.f32 0.0, %v1711
      %1713 = vmatmul.f32.gmra.mxu0 %v1603
      %v1714 = vpop.f32.mrf.mxu0
      %v1715 = vadd.f32 0.0, %v1714
      %1716 = vmatmul.f32.gmra.mxu0 %v1606
      %v1717 = vpop.f32.mrf.mxu0
      %v1718 = vadd.f32 0.0, %v1717
      %1719 = vmatmul.f32.gmra.mxu0 %v1609
      %v1720 = vpop.f32.mrf.mxu0
      %v1721 = vadd.f32 0.0, %v1720
      %1722 = vmatmul.f32.gmra.mxu0 %v1612
      %v1723 = vpop.f32.mrf.mxu0
      %v1724 = vadd.f32 0.0, %v1723
      %1725 = vmatmul.f32.gmra.mxu0 %v1615
      %v1726 = vpop.f32.mrf.mxu0
      %v1727 = vadd.f32 0.0, %v1726
      %1728 = vmatmul.f32.gmra.mxu0 %v1618
      %v1729 = vpop.f32.mrf.mxu0
      %v1730 = vadd.f32 0.0, %v1729
      %1731 = vmatmul.f32.gmra.mxu0 %v1621
      %v1732 = vpop.f32.mrf.mxu0
      %v1733 = vadd.f32 0.0, %v1732
      %1734 = vmatmul.f32.gmra.mxu0 %v1624
      %v1735 = vpop.f32.mrf.mxu0
      %v1736 = vadd.f32 0.0, %v1735
      %1737 = vmatmul.f32.gmra.mxu0 %v1627
      %v1738 = vpop.f32.mrf.mxu0
      %v1739 = vadd.f32 0.0, %v1738
      %1740 = vmatmul.f32.gmra.mxu0 %v1630
      %v1741 = vpop.f32.mrf.mxu0
      %v1742 = vadd.f32 0.0, %v1741
      %1743 = vmatmul.f32.gmra.mxu0 %v1633
      %v1744 = vpop.f32.mrf.mxu0
      %v1745 = vadd.f32 0.0, %v1744
      %1746 = vmatmul.f32.gmra.mxu0 %v1636
      %v1747 = vpop.f32.mrf.mxu0
      %v1748 = vadd.f32 0.0, %v1747
      %1749 = vdwg.mxu0
      %v1750 = vld [vmem:[%s212] sm:$0xff]
      %v1751 = vld [vmem:[%s212 + $0x8] sm:$0xff]
      %v1752 = vld [vmem:[%s212 + $0x10] sm:$0xff]
      %v1753 = vld [vmem:[%s212 + $0x18] sm:$0xff]
      %v1754 = vld [vmem:[%s212 + $0x20] sm:$0xff]
      %v1755 = vld [vmem:[%s212 + $0x28] sm:$0xff]
      %v1756 = vld [vmem:[%s212 + $0x30] sm:$0xff]
      %v1757 = vld [vmem:[%s212 + $0x38] sm:$0xff]
      %v1758 = vld [vmem:[%s212 + $0x40] sm:$0xff]
      %v1759 = vld [vmem:[%s212 + $0x48] sm:$0xff]
      %v1760 = vld [vmem:[%s212 + $0x50] sm:$0xff]
      %v1761 = vld [vmem:[%s212 + $0x58] sm:$0xff]
      %v1762 = vld [vmem:[%s212 + $0x60] sm:$0xff]
      %v1763 = vld [vmem:[%s212 + $0x68] sm:$0xff]
      %v1764 = vld [vmem:[%s212 + $0x70] sm:$0xff]
      %v1765 = vld [vmem:[%s212 + $0x78] sm:$0xff]
      %v1766 = vld [vmem:[%s212 + $0x80] sm:$0xff]
      %v1767 = vld [vmem:[%s212 + $0x88] sm:$0xff]
      %v1768 = vld [vmem:[%s212 + $0x90] sm:$0xff]
      %v1769 = vld [vmem:[%s212 + $0x98] sm:$0xff]
      %v1770 = vld [vmem:[%s212 + $0xa0] sm:$0xff]
      %v1771 = vld [vmem:[%s212 + $0xa8] sm:$0xff]
      %v1772 = vld [vmem:[%s212 + $0xb0] sm:$0xff]
      %v1773 = vld [vmem:[%s212 + $0xb8] sm:$0xff]
      %v1774 = vld [vmem:[%s212 + $0xc0] sm:$0x3f]
      %v1775 = vld [vmem:[%s212 + $0xc8] sm:$0x3f]
      %v1776 = vadd.f32 %v1750, %v1656
      %v1777 = vadd.f32 %v1751, %v1712
      %v1778 = vadd.f32 %v1752, %v1659
      %v1779 = vadd.f32 %v1753, %v1715
      %v1780 = vadd.f32 %v1754, %v1662
      %v1781 = vadd.f32 %v1755, %v1718
      %v1782 = vadd.f32 %v1756, %v1665
      %v1783 = vadd.f32 %v1757, %v1721
      %v1784 = vadd.f32 %v1758, %v1668
      %v1785 = vadd.f32 %v1759, %v1724
      %v1786 = vadd.f32 %v1760, %v1671
      %v1787 = vadd.f32 %v1761, %v1727
      %v1788 = vadd.f32 %v1762, %v1674
      %v1789 = vadd.f32 %v1763, %v1730
      %v1790 = vadd.f32 %v1764, %v1677
      %v1791 = vadd.f32 %v1765, %v1733
      %v1792 = vadd.f32 %v1766, %v1680
      %v1793 = vadd.f32 %v1767, %v1736
      %v1794 = vadd.f32 %v1768, %v1683
      %v1795 = vadd.f32 %v1769, %v1739
      %v1796 = vadd.f32 %v1770, %v1686
      %v1797 = vadd.f32 %v1771, %v1742
      %v1798 = vadd.f32 %v1772, %v1689
      %v1799 = vadd.f32 %v1773, %v1745
      %v1800 = vadd.f32 %v1774, %v1692
      %v1801 = vadd.f32 %v1775, %v1748
      %1802 = vst [vmem:[%s212] sm:$0xff] %v1776
      %1803 = vst.msk [vmem:[%s212 + $0x8] sm:$0xff] %vm565, %v1777
      %1804 = vst [vmem:[%s212 + $0x10] sm:$0xff] %v1778
      %1805 = vst.msk [vmem:[%s212 + $0x18] sm:$0xff] %vm565, %v1779
      %1806 = vst [vmem:[%s212 + $0x20] sm:$0xff] %v1780
      %1807 = vst.msk [vmem:[%s212 + $0x28] sm:$0xff] %vm565, %v1781
      %1808 = vst [vmem:[%s212 + $0x30] sm:$0xff] %v1782
      %1809 = vst.msk [vmem:[%s212 + $0x38] sm:$0xff] %vm565, %v1783
      %1810 = vst [vmem:[%s212 + $0x40] sm:$0xff] %v1784
      %1811 = vst.msk [vmem:[%s212 + $0x48] sm:$0xff] %vm565, %v1785
      %1812 = vst [vmem:[%s212 + $0x50] sm:$0xff] %v1786
      %1813 = vst.msk [vmem:[%s212 + $0x58] sm:$0xff] %vm565, %v1787
      %1814 = vst [vmem:[%s212 + $0x60] sm:$0xff] %v1788
      %1815 = vst.msk [vmem:[%s212 + $0x68] sm:$0xff] %vm565, %v1789
      %1816 = vst [vmem:[%s212 + $0x70] sm:$0xff] %v1790
      %1817 = vst.msk [vmem:[%s212 + $0x78] sm:$0xff] %vm565, %v1791
      %1818 = vst [vmem:[%s212 + $0x80] sm:$0xff] %v1792
      %1819 = vst.msk [vmem:[%s212 + $0x88] sm:$0xff] %vm565, %v1793
      %1820 = vst [vmem:[%s212 + $0x90] sm:$0xff] %v1794
      %1821 = vst.msk [vmem:[%s212 + $0x98] sm:$0xff] %vm565, %v1795
      %1822 = vst [vmem:[%s212 + $0xa0] sm:$0xff] %v1796
      %1823 = vst.msk [vmem:[%s212 + $0xa8] sm:$0xff] %vm565, %v1797
      %1824 = vst [vmem:[%s212 + $0xb0] sm:$0xff] %v1798
      %1825 = vst.msk [vmem:[%s212 + $0xb8] sm:$0xff] %vm565, %v1799
      %1826 = vst [vmem:[%s212 + $0xc0] sm:$0x3f] %v1800
      %1827 = vst.msk [vmem:[%s212 + $0xc8] sm:$0x3f] %vm590, %v1801
      %p1828 = scmp.lt.s32.totalorder %s19, 1
      %s1829 = scalar_select %p1828, %s19, 1
      %p1830 = scmp.lt.s32.totalorder %s18, 2
      %s1831 = scalar_select %p1830, %s18, 2
      %s1832 = smul.addr %s1831, 26
      %s1833 = smul.addr %s1829, 78
      %s1834 = sadd.s32 %s1832, %s1833
      %s1835 = smul.addr %s1834, 8
      %s1836 = scalar_lea.vmem %s3, %s1835
      // Predicated region
      $region33: #{decoder_forward.1} parent=31 // pred_check
        %p1837 = pneg %p119
      $region34: #{decoder_forward.1} parent=31 // pred_check_branch
        %1839 = sbr.rel (%p1837) target = $region36
      $region35: #{decoder_forward.1} parent=31 // pred_region
        _
      $region36: #{decoder_forward.1} parent=31 // pred_fallthru
        _
    $region32: #{decoder_forward.1} parent=5 // pred_fallthru
      _
    %p1840 = scmp.le.s32.totalorder 2, %s9
    // Predicated region
    $region37: #{decoder_forward.1} parent=5 // pred_check
      %p1841 = pneg %p1840
    $region38: #{decoder_forward.1} parent=5 // pred_check_branch
      %1843 = sbr.rel (%p1841) target = $region40
    $region39: #{decoder_forward.1} parent=5 // pred_region
      %s1844 = ssub.s32 %s9, 2
      // Predicated region
      $region41: #{decoder_forward.1} parent=39 // pred_check
        %p1845 = pneg %p125
      $region42: #{decoder_forward.1} parent=39 // pred_check_branch
        %1847 = sbr.rel (%p1845) target = $region44
      $region43: #{decoder_forward.1} parent=39 // pred_region
        %p1848 = scmp.lt.s32.totalorder %s21, 1
        %s1849 = scalar_select %p1848, %s21, 1
        %p1850 = scmp.lt.s32.totalorder %s20, 2
        %s1851 = scalar_select %p1850, %s20, 2
        %s1852 = smul.addr %s1851, 26
        %s1853 = smul.addr %s1849, 78
        %s1854 = sadd.s32 %s1852, %s1853
        %s1855 = smul.addr %s1854, 8
        %s1856 = scalar_lea.vmem %s3, %s1855
      $region44: #{decoder_forward.1} parent=39 // pred_fallthru
        _
    $region40: #{decoder_forward.1} parent=5 // pred_fallthru
      _
  $region6: #{decoder_forward.1} parent=0 // loop_footer
    %s13 = sadd.s32 1, %s9
  $region7: #{decoder_forward.1} parent=0 // loop_footer_branch
    %8 = sbr.rel target = $region3
  $region8: #{decoder_forward.1} parent=0 // loop_exit
    _

</llo_original>
